<compile_context>
chip_gen: v5e
topology: v5e:2x2
jax: 0.10.0
libtpu: 0.0.40
codegen_flags: <defaults>
</compile_context>

<pallas_src>
import functools

import jax
import jax.numpy as jnp
from jax import lax
from jax.experimental import pallas as pl
from jax.experimental.pallas import tpu as pltpu

BN_EPS = 1e-5
LEAKY_SLOPE = 0.5
LANE = 128


def _round_up(v, m):
    return (v + m - 1) // m * m


def _pick_tile(total, desired):
    """Largest multiple of 128 that divides `total` (a multiple of 128) and is <= desired."""
    t = max(LANE, (min(desired, total) // LANE) * LANE)
    while total % t:
        t -= LANE
    return t


def _vmem_limit_bytes():
    # ~3/4 of physical VMEM: 48 MiB on v7x (64 MiB physical), 96 MiB on v5e/v6e (128 MiB).
    phys = 64 * 1024 * 1024
    try:
        phys = int(pltpu.get_tpu_info().vmem_capacity_bytes)
    except Exception:
        pass
    return min(int(phys * 3 // 4), 100 * 1024 * 1024)


VMEM_LIMIT = _vmem_limit_bytes()


# --------------------------- Kernel A: fi(x) = tanh(x @ Wf + bf) ---------------------------
def _fi_kernel(x_ref, wf_ref, bf_ref, fi_ref, *, mxu_dtype):
    z = jnp.dot(x_ref[...].astype(mxu_dtype), wf_ref[...],
                preferred_element_type=jnp.float32) + bf_ref[...]
    fi_ref[...] = jnp.tanh(z).astype(fi_ref.dtype)


# --------------------------- Kernel B: P = adj @ fi  (k-reduction) -------------------------
def _agg1_kernel(adj_ref, fi_ref, p_ref, acc_ref, *, resident, tile_k):
    k = pl.program_id(1)

    @pl.when(k == 0)
    def _():
        acc_ref[...] = jnp.zeros_like(acc_ref)

    if resident:
        start = pl.multiple_of(k * tile_k, tile_k)
        rhs = fi_ref[pl.ds(start, tile_k), :]
    else:
        rhs = fi_ref[...]
    acc_ref[...] += jnp.dot(adj_ref[...], rhs, preferred_element_type=jnp.float32)

    @pl.when(k == pl.num_programs(1) - 1)
    def _():
        p_ref[...] = acc_ref[...].astype(p_ref.dtype)


# ------- Kernel C: Q = adj @ P ; h = leaky_relu(Q @ W1 + b1) ; masked partial BN sums ------
def _agg2_interm_kernel(adj_ref, p_ref, w1_ref, b1_ref,
                        h_ref, psum_ref, psumsq_ref, acc_ref,
                        *, resident, tile_k, tile_m, n_valid, mxu_dtype):
    i = pl.program_id(0)
    k = pl.program_id(1)

    @pl.when(k == 0)
    def _():
        acc_ref[...] = jnp.zeros_like(acc_ref)

    if resident:
        start = pl.multiple_of(k * tile_k, tile_k)
        rhs = p_ref[pl.ds(start, tile_k), :]
    else:
        rhs = p_ref[...]
    acc_ref[...] += jnp.dot(adj_ref[...], rhs, preferred_element_type=jnp.float32)

    @pl.when(k == pl.num_programs(1) - 1)
    def _():
        h = jnp.dot(acc_ref[...].astype(mxu_dtype), w1_ref[...],
                    preferred_element_type=jnp.float32) + b1_ref[...]
        h = jnp.where(h > 0, h, LEAKY_SLOPE * h)
        h_ref[...] = h.astype(h_ref.dtype)
        # Mask rows that are pure padding so the global BN statistics stay exact.
        row = i * tile_m + lax.broadcasted_iota(jnp.int32, (tile_m, 1), 0)
        hm = jnp.where(row < n_valid, h, 0.0)
        psum_ref[...] = jnp.sum(hm, axis=0, keepdims=True)[None]
        psumsq_ref[...] = jnp.sum(hm * hm, axis=0, keepdims=True)[None]


# ----- Kernel D: BN apply + coeffs linear + tanh-VJP (recomputed fi) + sphere proju --------
def _epilogue_kernel(x_ref, h_ref, scale_ref, shift_ref,
                     w2_ref, b2_ref, wf_ref, bf_ref, wft_ref, out_ref, *, mxu_dtype):
    x = x_ref[...]
    fi = jnp.tanh(jnp.dot(x.astype(mxu_dtype), wf_ref[...],
                          preferred_element_type=jnp.float32) + bf_ref[...])
    hn = h_ref[...].astype(jnp.float32) * scale_ref[...] + shift_ref[...]
    coeffs = jnp.dot(hn.astype(mxu_dtype), w2_ref[...],
                     preferred_element_type=jnp.float32) + b2_ref[...]
    cd = (coeffs * (1.0 - fi * fi)).astype(mxu_dtype)
    g = jnp.dot(cd, wft_ref[...], preferred_element_type=jnp.float32)  # pre-transposed Wf^T
    inner = jnp.sum(x * g, axis=-1, keepdims=True)
    out_ref[...] = (g - inner * x).astype(out_ref.dtype)


# --------------- Fused small-problem kernel: everything VMEM-resident, one call ------------
def _fused_kernel(x_ref, adj_ref, wf_ref, bf_ref, w1_ref, b1_ref,
                  gamma_ref, beta_ref, w2_ref, b2_ref, wft_ref, out_ref,
                  *, n_valid, mxu_dtype, compute_dtype):
    x = x_ref[...]
    adj = adj_ref[...]
    fi = jnp.tanh(jnp.dot(x.astype(mxu_dtype), wf_ref[...],
                          preferred_element_type=jnp.float32) + bf_ref[...])
    p = jnp.dot(adj, fi.astype(compute_dtype), preferred_element_type=jnp.float32)
    q = jnp.dot(adj, p.astype(compute_dtype), preferred_element_type=jnp.float32)
    h = jnp.dot(q.astype(mxu_dtype), w1_ref[...],
                preferred_element_type=jnp.float32) + b1_ref[...]
    h = jnp.where(h > 0, h, LEAKY_SLOPE * h)
    row = lax.broadcasted_iota(jnp.int32, (h.shape[0], 1), 0)
    hm = jnp.where(row < n_valid, h, 0.0)
    mu = jnp.sum(hm, axis=0, keepdims=True) / n_valid
    var = jnp.maximum(jnp.sum(hm * hm, axis=0, keepdims=True) / n_valid - mu * mu, 0.0)
    inv_std = lax.rsqrt(var + BN_EPS)
    scale = gamma_ref[...] * inv_std          # padded lanes: gamma=0 -> scale=0
    shift = beta_ref[...] - mu * scale
    hn = h * scale + shift
    coeffs = jnp.dot(hn.astype(mxu_dtype), w2_ref[...],
                     preferred_element_type=jnp.float32) + b2_ref[...]
    cd = (coeffs * (1.0 - fi * fi)).astype(mxu_dtype)
    g = jnp.dot(cd, wft_ref[...], preferred_element_type=jnp.float32)
    inner = jnp.sum(x * g, axis=-1, keepdims=True)
    out_ref[...] = (g - inner * x).astype(out_ref.dtype)


@functools.partial(jax.jit, static_argnames=("compute_dtype", "force_tiled", "resident_rhs",
                                              "tile_m", "tile_k", "tile_a", "tile_d"))
def feature_map_vec_field_forward(x, adj, params, *, compute_dtype=jnp.bfloat16,
                                  force_tiled=False, resident_rhs=None,
                                  tile_m=512, tile_k=1024, tile_a=256, tile_d=256):
    """Fused forward. x: (N, D) float32, adj: (N, N) (float32 or pre-cast compute_dtype)."""
    N, D = x.shape
    F_dim = params["wf"].shape[1]
    I_dim = params["w1"].shape[1]
    f32 = jnp.float32
    mxu_dtype = compute_dtype          # bf16 operands + f32 accumulation in perf config

    Dp = _round_up(D, LANE)
    Fp = _round_up(F_dim, LANE)
    Ip = _round_up(I_dim, LANE)
    Np = _round_up(N, LANE)
    cd_bytes = jnp.dtype(compute_dtype).itemsize

    # ---- lane-dense zero padding (exact: padded rows/cols contribute exactly zero) ----
    x_p = jnp.zeros((Np, Dp), f32).at[:N, :D].set(x.astype(f32))
    # Skip the extra O(N^2) pad/cast HBM pass when adj is already aligned & in compute dtype.
    if adj.shape == (Np, Np) and adj.dtype == jnp.dtype(compute_dtype):
        adj_p = adj
    else:
        adj_p = jnp.zeros((Np, Np), compute_dtype).at[:N, :N].set(adj.astype(compute_dtype))

    wf_p = jnp.zeros((Dp, Fp), f32).at[:D, :F_dim].set(params["wf"].astype(f32))
    bf_p = jnp.zeros((1, Fp), f32).at[0, :F_dim].set(params["bf"].astype(f32))
    w1_p = jnp.zeros((Fp, Ip), f32).at[:F_dim, :I_dim].set(params["w1"].astype(f32))
    b1_p = jnp.zeros((1, Ip), f32).at[0, :I_dim].set(params["b1"].astype(f32))
    gamma_p = jnp.zeros((1, Ip), f32).at[0, :I_dim].set(params["gamma"].astype(f32))
    beta_p = jnp.zeros((1, Ip), f32).at[0, :I_dim].set(params["beta"].astype(f32))
    w2_p = jnp.zeros((Ip, Fp), f32).at[:I_dim, :F_dim].set(params["w2"].astype(f32))
    b2_p = jnp.zeros((1, Fp), f32).at[0, :F_dim].set(params["b2"].astype(f32))
    wft_p = wf_p.T                                  # Wf^T precomputed once (no in-kernel vxpose)

    wf_mx = wf_p.astype(mxu_dtype)
    w1_mx = w1_p.astype(mxu_dtype)
    w2_mx = w2_p.astype(mxu_dtype)
    wft_mx = wft_p.astype(mxu_dtype)

    # ------------------------- small-problem fully-fused dispatch -------------------------
    fused_bytes = (2 * Np * Np * cd_bytes
                   + 4 * Np * Dp * 4
                   + 12 * Np * max(Fp, Ip) * 4
                   + 4 * (Dp * Fp + Fp * Ip + Ip * Fp + Fp * Dp))
    use_fused = (not force_tiled) and Np <= 2048 and fused_bytes <= int(VMEM_LIMIT * 0.7)

    if use_fused:
        def full(shape):
            return pl.BlockSpec(shape, lambda i, _s=shape: tuple(0 for _ in _s))

        kern = functools.partial(_fused_kernel, n_valid=N, mxu_dtype=mxu_dtype,
                                 compute_dtype=compute_dtype)
        out_p = pl.pallas_call(
            kern,
            out_shape=jax.ShapeDtypeStruct((Np, Dp), f32),
            grid_spec=pltpu.PrefetchScalarGridSpec(
                num_scalar_prefetch=0, grid=(1,),
                in_specs=[full((Np, Dp)), full((Np, Np)), full((Dp, Fp)), full((1, Fp)),
                          full((Fp, Ip)), full((1, Ip)), full((1, Ip)), full((1, Ip)),
                          full((Ip, Fp)), full((1, Fp)), full((Fp, Dp))],
                out_specs=full((Np, Dp)),
            ),
            compiler_params=pltpu.CompilerParams(vmem_limit_bytes=VMEM_LIMIT),
            cost_estimate=pl.CostEstimate(
                flops=4 * Np * Np * Fp + 2 * Np * (2 * Dp * Fp + Fp * Ip + Ip * Fp),
                transcendentals=2 * Np * Fp,
                bytes_accessed=Np * Np * cd_bytes + 8 * Np * Dp),
        )(x_p, adj_p, wf_mx, bf_p, w1_mx, b1_p, gamma_p, beta_p, w2_mx, b2_p, wft_mx)
        return out_p[:N, :D]

    # ------------------------------------ tiled pipeline ----------------------------------
    tm = _pick_tile(Np, tile_m)     # row tile of the adj GEMMs (large)
    tk = _pick_tile(Np, tile_k)     # reduction tile of the adj GEMMs (large)
    ta = _pick_tile(Np, tile_a)     # row tile of Kernel A
    td = _pick_tile(Np, tile_d)     # row tile of Kernel D (kept small: many live temporaries)
    n_i = Np // tm
    n_k = Np // tk

    # Keep fi / P fully VMEM-resident (fetched once) when they + the streaming tiles fit.
    fw = max(Fp, Ip)
    stream_bytes = (2 * tm * tk * cd_bytes + 2 * tm * fw * cd_bytes
                    + 2 * tm * fw * 4 + 2 * tk * fw * cd_bytes)
    if resident_rhs is None:
        resident = (2 * Np * fw * cd_bytes + stream_bytes) <= int(VMEM_LIMIT * 0.8)
    else:
        resident = bool(resident_rhs)

    cp_1d = pltpu.CompilerParams(dimension_semantics=("parallel",),
                                 vmem_limit_bytes=VMEM_LIMIT)
    cp_2d = pltpu.CompilerParams(dimension_semantics=("parallel", "arbitrary"),
                                 vmem_limit_bytes=VMEM_LIMIT)

    # ---------------- Kernel A: fi(x), row-tiled ----------------
    fi_x = pl.pallas_call(
        functools.partial(_fi_kernel, mxu_dtype=mxu_dtype),
        out_shape=jax.ShapeDtypeStruct((Np, Fp), compute_dtype),
        grid_spec=pltpu.PrefetchScalarGridSpec(
            num_scalar_prefetch=0, grid=(Np // ta,),
            in_specs=[pl.BlockSpec((ta, Dp), lambda i: (i, 0)),
                      pl.BlockSpec((Dp, Fp), lambda i: (0, 0)),
                      pl.BlockSpec((1, Fp), lambda i: (0, 0))],
            out_specs=pl.BlockSpec((ta, Fp), lambda i: (i, 0)),
        ),
        compiler_params=cp_1d,
        cost_estimate=pl.CostEstimate(
            flops=2 * Np * Dp * Fp, transcendentals=Np * Fp,
            bytes_accessed=4 * Np * Dp + cd_bytes * Np * Fp),
    )(x_p, wf_mx, bf_p)

    # ---------------- Kernel B: P = adj @ fi ----------------
    fi_spec = (pl.BlockSpec((Np, Fp), lambda i, k: (0, 0)) if resident
               else pl.BlockSpec((tk, Fp), lambda i, k: (k, 0)))
    p_agg = pl.pallas_call(
        functools.partial(_agg1_kernel, resident=resident, tile_k=tk),
        out_shape=jax.ShapeDtypeStruct((Np, Fp), compute_dtype),
        grid_spec=pltpu.PrefetchScalarGridSpec(
            num_scalar_prefetch=0, grid=(n_i, n_k),
            in_specs=[pl.BlockSpec((tm, tk), lambda i, k: (i, k)), fi_spec],
            out_specs=pl.BlockSpec((tm, Fp), lambda i, k: (i, 0)),
            scratch_shapes=[pltpu.VMEM((tm, Fp), jnp.float32)],
        ),
        compiler_params=cp_2d,
        cost_estimate=pl.CostEstimate(
            flops=2 * Np * Np * Fp, transcendentals=0,
            bytes_accessed=cd_bytes * (Np * Np + (Np if resident else n_i * Np) * Fp
                                       + Np * Fp)),
    )(adj_p, fi_x)

    # ---------------- Kernel C: Q = adj @ P ; h ; masked partial BN sums ----------------
    p_spec = (pl.BlockSpec((Np, Fp), lambda i, k: (0, 0)) if resident
              else pl.BlockSpec((tk, Fp), lambda i, k: (k, 0)))
    kern_c = functools.partial(_agg2_interm_kernel, resident=resident, tile_k=tk,
                               tile_m=tm, n_valid=N, mxu_dtype=mxu_dtype)
    h, psum, psumsq = pl.pallas_call(
        kern_c,
        out_shape=(jax.ShapeDtypeStruct((Np, Ip), compute_dtype),
                   jax.ShapeDtypeStruct((n_i, 1, Ip), jnp.float32),
                   jax.ShapeDtypeStruct((n_i, 1, Ip), jnp.float32)),
        grid_spec=pltpu.PrefetchScalarGridSpec(
            num_scalar_prefetch=0, grid=(n_i, n_k),
            in_specs=[pl.BlockSpec((tm, tk), lambda i, k: (i, k)),
                      p_spec,
                      pl.BlockSpec((Fp, Ip), lambda i, k: (0, 0)),
                      pl.BlockSpec((1, Ip), lambda i, k: (0, 0))],
            out_specs=[pl.BlockSpec((tm, Ip), lambda i, k: (i, 0)),
                       pl.BlockSpec((1, 1, Ip), lambda i, k: (i, 0, 0)),
                       pl.BlockSpec((1, 1, Ip), lambda i, k: (i, 0, 0))],
            scratch_shapes=[pltpu.VMEM((tm, Fp), jnp.float32)],
        ),
        compiler_params=cp_2d,
        cost_estimate=pl.CostEstimate(
            flops=2 * Np * Np * Fp + 2 * Np * Fp * Ip, transcendentals=0,
            bytes_accessed=cd_bytes * (Np * Np + (Np if resident else n_i * Np) * Fp
                                       + Np * Ip)),
    )(adj_p, p_agg, w1_mx, b1_p)

    # ---------------- BatchNorm statistics (global over the true N rows) ----------------
    total = jnp.sum(psum, axis=0)
    total_sq = jnp.sum(psumsq, axis=0)
    mu = total / N
    # TODO(synk): E[h^2]-E[h]^2 from f32 partials can cancel when |mean| >> std at very
    #             large N; a mean-shifted two-pass accumulator would be more robust.
    var = jnp.maximum(total_sq / N - mu * mu, 0.0)   # biased variance (PyTorch BN training)
    inv_std = lax.rsqrt(var + BN_EPS)
    scale = gamma_p * inv_std                        # padded lanes: gamma=0 -> scale=0
    shift = beta_p - mu * scale

    # ---------------- Kernel D: BN apply + coeffs + tanh-VJP + sphere proju ----------------
    out_p = pl.pallas_call(
        functools.partial(_epilogue_kernel, mxu_dtype=mxu_dtype),
        out_shape=jax.ShapeDtypeStruct((Np, Dp), f32),
        grid_spec=pltpu.PrefetchScalarGridSpec(
            num_scalar_prefetch=0, grid=(Np // td,),
            in_specs=[pl.BlockSpec((td, Dp), lambda i: (i, 0)),
                      pl.BlockSpec((td, Ip), lambda i: (i, 0)),
                      pl.BlockSpec((1, Ip), lambda i: (0, 0)),
                      pl.BlockSpec((1, Ip), lambda i: (0, 0)),
                      pl.BlockSpec((Ip, Fp), lambda i: (0, 0)),
                      pl.BlockSpec((1, Fp), lambda i: (0, 0)),
                      pl.BlockSpec((Dp, Fp), lambda i: (0, 0)),
                      pl.BlockSpec((1, Fp), lambda i: (0, 0)),
                      pl.BlockSpec((Fp, Dp), lambda i: (0, 0))],
            out_specs=pl.BlockSpec((td, Dp), lambda i: (i, 0)),
        ),
        compiler_params=cp_1d,
        cost_estimate=pl.CostEstimate(
            flops=2 * Np * (Ip * Fp + 2 * Dp * Fp) + 6 * Np * Dp,
            transcendentals=Np * Fp,
            bytes_accessed=8 * Np * Dp + cd_bytes * Np * Ip),
    )(x_p, h, scale, shift, w2_mx, b2_p, wf_mx, bf_p, wft_mx)

    return out_p[:N, :D]


# ---------------- pure-JAX reference (uses jax.vjp for the autograd.grad step) -------------
def _fi(x, wf, bf):
    return jnp.tanh(x @ wf + bf)


def reference_forward(x, adj, p):
    feat = _fi(x, p["wf"], p["bf"])
    feat = adj @ (adj @ feat)
    h = feat @ p["w1"] + p["b1"]
    h = jnp.where(h > 0, h, LEAKY_SLOPE * h)
    mu = h.mean(axis=0)
    var = ((h - mu) ** 2).mean(axis=0)
    hn = (h - mu) / jnp.sqrt(var + BN_EPS) * p["gamma"] + p["beta"]
    coeffs = hn @ p["w2"] + p["b2"]
    _, vjp_fn = jax.vjp(lambda xx: _fi(xx, p["wf"], p["bf"]), x)
    g = vjp_fn(coeffs)[0]
    return g - jnp.sum(x * g, axis=-1, keepdims=True) * x


def _make_inputs(n, d, f_dim, i_dim, seed=0):
    key = jax.random.PRNGKey(seed)
    ks = jax.random.split(key, 12)
    x = jax.random.normal(ks[0], (n, d), dtype=jnp.float32)
    x = x / jnp.linalg.norm(x, axis=-1, keepdims=True)         # base points on the unit sphere
    a = jax.random.uniform(ks[1], (n, n), dtype=jnp.float32)
    # symmetric adjacency with heterogeneous self-loops (keeps BatchNorm well-conditioned)
    adj = 0.5 * (a + a.T) / n + jnp.diag(0.5 + 0.5 * jax.random.uniform(ks[2], (n,),
                                                                        dtype=jnp.float32))
    params = {
        "wf":    0.2 * jax.random.normal(ks[3], (d, f_dim), dtype=jnp.float32),
        "bf":    0.1 * jax.random.normal(ks[4], (f_dim,), dtype=jnp.float32),
        "w1":    0.2 * jax.random.normal(ks[5], (f_dim, i_dim), dtype=jnp.float32),
        "b1":    0.1 * jax.random.normal(ks[6], (i_dim,), dtype=jnp.float32),
        "gamma": 1.0 + 0.05 * jax.random.normal(ks[7], (i_dim,), dtype=jnp.float32),
        "beta":  0.05 * jax.random.normal(ks[8], (i_dim,), dtype=jnp.float32),
        "w2":    0.2 * jax.random.normal(ks[9], (i_dim, f_dim), dtype=jnp.float32),
        "b2":    0.1 * jax.random.normal(ks[10], (f_dim,), dtype=jnp.float32),
    }
    return x, adj, params


if __name__ == "__main__":
    D, F_DIM, I_DIM = 16, 32, 32

    # ---- Case 1: small graph -> fully-fused single pallas_call path ----
    N1 = 200
    x1, adj1, params1 = _make_inputs(N1, D, F_DIM, I_DIM, seed=0)
    with jax.default_matmul_precision("highest"):
        ref1 = jax.block_until_ready(reference_forward(x1, adj1, params1))

    out1 = jax.block_until_ready(
        feature_map_vec_field_forward(x1, adj1, params1, compute_dtype=jnp.float32))
    assert out1.shape == (N1, D)
    assert bool(jnp.allclose(out1, ref1, rtol=2e-3, atol=1e-3)), "fused f32 path mismatch"

    out1_bf = jax.block_until_ready(
        feature_map_vec_field_forward(x1, adj1, params1, compute_dtype=jnp.bfloat16))
    assert bool(jnp.all(jnp.isfinite(out1_bf)))
    assert bool(jnp.allclose(out1_bf, ref1, rtol=0.2, atol=0.1)), "fused bf16 path grossly off"

    # ---- Case 2: force the tiled multi-kernel pipeline (grids, k-reduction, resident and
    #      streamed fi/P paths, adj pad-skip since N2 is already 128-aligned) ----
    N2 = 384
    x2, adj2, params2 = _make_inputs(N2, D, F_DIM, I_DIM, seed=1)
    with jax.default_matmul_precision("highest"):
        ref2 = jax.block_until_ready(reference_forward(x2, adj2, params2))

    out2 = jax.block_until_ready(
        feature_map_vec_field_forward(x2, adj2, params2, compute_dtype=jnp.float32,
                                      force_tiled=True,
                                      tile_m=128, tile_k=128, tile_a=128, tile_d=128))
    assert out2.shape == (N2, D)
    assert bool(jnp.allclose(out2, ref2, rtol=2e-3, atol=1e-3)), "tiled f32 path mismatch"

    out2_bf = jax.block_until_ready(
        feature_map_vec_field_forward(x2, adj2, params2, compute_dtype=jnp.bfloat16,
                                      force_tiled=True, resident_rhs=False,
                                      tile_m=128, tile_k=128, tile_a=128, tile_d=128))
    assert bool(jnp.all(jnp.isfinite(out2_bf)))
    assert bool(jnp.allclose(out2_bf, ref2, rtol=0.2, atol=0.1)), "tiled bf16 path grossly off"

    print("KERNEL_OK")
</pallas_src>

<mosaic_0001>
module attributes {stable_mosaic.version = 11 : i64} {
  func.func @_fused_kernel(%arg0: i32, %arg1: memref<256x128xf32, #tpu.memory_space<vmem>>, %arg2: memref<256x256xf32, #tpu.memory_space<vmem>>, %arg3: memref<128x128xf32, #tpu.memory_space<vmem>>, %arg4: memref<1x128xf32, #tpu.memory_space<vmem>>, %arg5: memref<128x128xf32, #tpu.memory_space<vmem>>, %arg6: memref<1x128xf32, #tpu.memory_space<vmem>>, %arg7: memref<1x128xf32, #tpu.memory_space<vmem>>, %arg8: memref<1x128xf32, #tpu.memory_space<vmem>>, %arg9: memref<128x128xf32, #tpu.memory_space<vmem>>, %arg10: memref<1x128xf32, #tpu.memory_space<vmem>>, %arg11: memref<128x128xf32, #tpu.memory_space<vmem>>, %arg12: memref<256x128xf32, #tpu.memory_space<vmem>>) attributes {dimension_semantics = [#tpu.dimension_semantics<arbitrary>], iteration_bounds = array<i64: 1>, scalar_prefetch = 0 : i64, scratch_operands = 0 : i64, tpu.core_type = #tpu.core_type<tc>, window_params = [{pipeline_mode = #tpu.pipeline_mode<synchronous>, transform_indices = @transform_0, window_bounds = array<i64: 256, 128>}, {pipeline_mode = #tpu.pipeline_mode<synchronous>, transform_indices = @transform_1, window_bounds = array<i64: 256, 256>}, {pipeline_mode = #tpu.pipeline_mode<synchronous>, transform_indices = @transform_2, window_bounds = array<i64: 128, 128>}, {pipeline_mode = #tpu.pipeline_mode<synchronous>, transform_indices = @transform_3, window_bounds = array<i64: 1, 128>}, {pipeline_mode = #tpu.pipeline_mode<synchronous>, transform_indices = @transform_4, window_bounds = array<i64: 128, 128>}, {pipeline_mode = #tpu.pipeline_mode<synchronous>, transform_indices = @transform_5, window_bounds = array<i64: 1, 128>}, {pipeline_mode = #tpu.pipeline_mode<synchronous>, transform_indices = @transform_6, window_bounds = array<i64: 1, 128>}, {pipeline_mode = #tpu.pipeline_mode<synchronous>, transform_indices = @transform_7, window_bounds = array<i64: 1, 128>}, {pipeline_mode = #tpu.pipeline_mode<synchronous>, transform_indices = @transform_8, window_bounds = array<i64: 128, 128>}, {pipeline_mode = #tpu.pipeline_mode<synchronous>, transform_indices = @transform_9, window_bounds = array<i64: 1, 128>}, {pipeline_mode = #tpu.pipeline_mode<synchronous>, transform_indices = @transform_10, window_bounds = array<i64: 128, 128>}, {pipeline_mode = #tpu.pipeline_mode<synchronous>, transform_indices = @transform_11, window_bounds = array<i64: 256, 128>}]} {
    %c0 = arith.constant 0 : index
    %c0_0 = arith.constant 0 : index
    %0 = vector.load %arg1[%c0, %c0_0] : memref<256x128xf32, #tpu.memory_space<vmem>>, vector<256x128xf32>
    %c0_1 = arith.constant 0 : index
    %c0_2 = arith.constant 0 : index
    %1 = vector.load %arg2[%c0_1, %c0_2] : memref<256x256xf32, #tpu.memory_space<vmem>>, vector<256x256xf32>
    %c0_3 = arith.constant 0 : index
    %c0_4 = arith.constant 0 : index
    %2 = vector.load %arg3[%c0_3, %c0_4] : memref<128x128xf32, #tpu.memory_space<vmem>>, vector<128x128xf32>
    %cst = arith.constant dense<0.000000e+00> : vector<256x128xf32>
    %3 = tpu.matmul %0, %2, %cst {dimension_numbers = #tpu.dot_dimension_numbers<[1], [0], [0], [1], [0, 0, 1, 1], [], []>} : vector<256x128xf32>, vector<128x128xf32>, vector<256x128xf32> -> vector<256x128xf32>
    %c0_5 = arith.constant 0 : index
    %c0_6 = arith.constant 0 : index
    %4 = vector.load %arg4[%c0_5, %c0_6] : memref<1x128xf32, #tpu.memory_space<vmem>>, vector<1x128xf32>
    %5 = vector.broadcast %4 : vector<1x128xf32> to vector<256x128xf32>
    %6 = arith.addf %3, %5 : vector<256x128xf32>
    %7 = math.tanh %6 : vector<256x128xf32>
    %cst_7 = arith.constant dense<0.000000e+00> : vector<256x128xf32>
    %8 = tpu.matmul %1, %7, %cst_7 {dimension_numbers = #tpu.dot_dimension_numbers<[1], [0], [0], [1], [0, 0, 1, 1], [], []>} : vector<256x256xf32>, vector<256x128xf32>, vector<256x128xf32> -> vector<256x128xf32>
    %cst_8 = arith.constant dense<0.000000e+00> : vector<256x128xf32>
    %9 = tpu.matmul %1, %8, %cst_8 {dimension_numbers = #tpu.dot_dimension_numbers<[1], [0], [0], [1], [0, 0, 1, 1], [], []>} : vector<256x256xf32>, vector<256x128xf32>, vector<256x128xf32> -> vector<256x128xf32>
    %c0_9 = arith.constant 0 : index
    %c0_10 = arith.constant 0 : index
    %10 = vector.load %arg5[%c0_9, %c0_10] : memref<128x128xf32, #tpu.memory_space<vmem>>, vector<128x128xf32>
    %cst_11 = arith.constant dense<0.000000e+00> : vector<256x128xf32>
    %11 = tpu.matmul %9, %10, %cst_11 {dimension_numbers = #tpu.dot_dimension_numbers<[1], [0], [0], [1], [0, 0, 1, 1], [], []>} : vector<256x128xf32>, vector<128x128xf32>, vector<256x128xf32> -> vector<256x128xf32>
    %c0_12 = arith.constant 0 : index
    %c0_13 = arith.constant 0 : index
    %12 = vector.load %arg6[%c0_12, %c0_13] : memref<1x128xf32, #tpu.memory_space<vmem>>, vector<1x128xf32>
    %13 = vector.broadcast %12 : vector<1x128xf32> to vector<256x128xf32>
    %14 = arith.addf %11, %13 : vector<256x128xf32>
    %cst_14 = arith.constant 0.000000e+00 : f32
    %15 = vector.broadcast %cst_14 : f32 to vector<256x128xf32>
    %16 = arith.cmpf ogt, %14, %15 : vector<256x128xf32>
    %cst_15 = arith.constant 5.000000e-01 : f32
    %17 = vector.broadcast %cst_15 : f32 to vector<256x128xf32>
    %18 = arith.mulf %17, %14 : vector<256x128xf32>
    %19 = arith.select %16, %14, %18 : vector<256x128xi1>, vector<256x128xf32>
    %20 = tpu.iota {dimensions = array<i32: 0>} : vector<256x1xi32>
    %c200_i32 = arith.constant 200 : i32
    %21 = vector.broadcast %c200_i32 : i32 to vector<256x1xi32>
    %22 = arith.cmpi slt, %20, %21 : vector<256x1xi32>
    %cst_16 = arith.constant 0.000000e+00 : f32
    %23 = vector.shape_cast %22 : vector<256x1xi1> to vector<256x1xi1>
    %24 = vector.broadcast %23 : vector<256x1xi1> to vector<256x128xi1>
    %25 = vector.broadcast %cst_16 : f32 to vector<256x128xf32>
    %26 = arith.select %24, %19, %25 : vector<256x128xi1>, vector<256x128xf32>
    %cst_17 = arith.constant dense<0.000000e+00> : vector<128xf32>
    %27 = vector.multi_reduction <add>, %26, %cst_17 [0] : vector<256x128xf32> to vector<128xf32>
    %28 = vector.shape_cast %27 : vector<128xf32> to vector<1x128xf32>
    %cst_18 = arith.constant 2.000000e+02 : f32
    %29 = vector.broadcast %cst_18 : f32 to vector<1x128xf32>
    %30 = arith.divf %28, %29 : vector<1x128xf32>
    %31 = arith.mulf %26, %26 : vector<256x128xf32>
    %cst_19 = arith.constant dense<0.000000e+00> : vector<128xf32>
    %32 = vector.multi_reduction <add>, %31, %cst_19 [0] : vector<256x128xf32> to vector<128xf32>
    %33 = vector.shape_cast %32 : vector<128xf32> to vector<1x128xf32>
    %cst_20 = arith.constant 2.000000e+02 : f32
    %34 = vector.broadcast %cst_20 : f32 to vector<1x128xf32>
    %35 = arith.divf %33, %34 : vector<1x128xf32>
    %36 = arith.mulf %30, %30 : vector<1x128xf32>
    %37 = arith.subf %35, %36 : vector<1x128xf32>
    %cst_21 = arith.constant 0.000000e+00 : f32
    %38 = vector.broadcast %cst_21 : f32 to vector<1x128xf32>
    %39 = arith.maximumf %37, %38 : vector<1x128xf32>
    %cst_22 = arith.constant 9.99999974E-6 : f32
    %40 = vector.broadcast %cst_22 : f32 to vector<1x128xf32>
    %41 = arith.addf %39, %40 : vector<1x128xf32>
    %42 = math.rsqrt %41 : vector<1x128xf32>
    %c0_23 = arith.constant 0 : index
    %c0_24 = arith.constant 0 : index
    %43 = vector.load %arg7[%c0_23, %c0_24] : memref<1x128xf32, #tpu.memory_space<vmem>>, vector<1x128xf32>
    %44 = arith.mulf %43, %42 : vector<1x128xf32>
    %c0_25 = arith.constant 0 : index
    %c0_26 = arith.constant 0 : index
    %45 = vector.load %arg8[%c0_25, %c0_26] : memref<1x128xf32, #tpu.memory_space<vmem>>, vector<1x128xf32>
    %46 = arith.mulf %30, %44 : vector<1x128xf32>
    %47 = arith.subf %45, %46 : vector<1x128xf32>
    %48 = vector.broadcast %44 : vector<1x128xf32> to vector<256x128xf32>
    %49 = arith.mulf %19, %48 : vector<256x128xf32>
    %50 = vector.broadcast %47 : vector<1x128xf32> to vector<256x128xf32>
    %51 = arith.addf %49, %50 : vector<256x128xf32>
    %c0_27 = arith.constant 0 : index
    %c0_28 = arith.constant 0 : index
    %52 = vector.load %arg9[%c0_27, %c0_28] : memref<128x128xf32, #tpu.memory_space<vmem>>, vector<128x128xf32>
    %cst_29 = arith.constant dense<0.000000e+00> : vector<256x128xf32>
    %53 = tpu.matmul %51, %52, %cst_29 {dimension_numbers = #tpu.dot_dimension_numbers<[1], [0], [0], [1], [0, 0, 1, 1], [], []>} : vector<256x128xf32>, vector<128x128xf32>, vector<256x128xf32> -> vector<256x128xf32>
    %c0_30 = arith.constant 0 : index
    %c0_31 = arith.constant 0 : index
    %54 = vector.load %arg10[%c0_30, %c0_31] : memref<1x128xf32, #tpu.memory_space<vmem>>, vector<1x128xf32>
    %55 = vector.broadcast %54 : vector<1x128xf32> to vector<256x128xf32>
    %56 = arith.addf %53, %55 : vector<256x128xf32>
    %57 = arith.mulf %7, %7 : vector<256x128xf32>
    %cst_32 = arith.constant 1.000000e+00 : f32
    %58 = vector.broadcast %cst_32 : f32 to vector<256x128xf32>
    %59 = arith.subf %58, %57 : vector<256x128xf32>
    %60 = arith.mulf %56, %59 : vector<256x128xf32>
    %c0_33 = arith.constant 0 : index
    %c0_34 = arith.constant 0 : index
    %61 = vector.load %arg11[%c0_33, %c0_34] : memref<128x128xf32, #tpu.memory_space<vmem>>, vector<128x128xf32>
    %cst_35 = arith.constant dense<0.000000e+00> : vector<256x128xf32>
    %62 = tpu.matmul %60, %61, %cst_35 {dimension_numbers = #tpu.dot_dimension_numbers<[1], [0], [0], [1], [0, 0, 1, 1], [], []>} : vector<256x128xf32>, vector<128x128xf32>, vector<256x128xf32> -> vector<256x128xf32>
    %63 = arith.mulf %0, %62 : vector<256x128xf32>
    %cst_36 = arith.constant dense<0.000000e+00> : vector<256xf32>
    %64 = vector.multi_reduction <add>, %63, %cst_36 [1] : vector<256x128xf32> to vector<256xf32>
    %65 = vector.shape_cast %64 : vector<256xf32> to vector<256x1xf32>
    %66 = vector.broadcast %65 : vector<256x1xf32> to vector<256x128xf32>
    %67 = arith.mulf %66, %0 : vector<256x128xf32>
    %68 = arith.subf %62, %67 : vector<256x128xf32>
    %c0_37 = arith.constant 0 : index
    %c0_38 = arith.constant 0 : index
    %69 = vector.load %arg12[%c0_37, %c0_38] : memref<256x128xf32, #tpu.memory_space<vmem>>, vector<256x128xf32>
    tpu.vector_store %arg12[%c0_37, %c0_38], %68 {strides = array<i32>} : memref<256x128xf32, #tpu.memory_space<vmem>>, vector<256x128xf32>,
    return
  }
  func.func @transform_0(%arg0: i32) -> (i32, i32) {
    %c0_i32 = arith.constant 0 : i32
    %c0_i32_0 = arith.constant 0 : i32
    %c0_i32_1 = arith.constant 0 : i32
    return %c0_i32, %c0_i32_0 : i32, i32
  }
  func.func @transform_1(%arg0: i32) -> (i32, i32) {
    %c0_i32 = arith.constant 0 : i32
    %c0_i32_0 = arith.constant 0 : i32
    %c0_i32_1 = arith.constant 0 : i32
    return %c0_i32, %c0_i32_0 : i32, i32
  }
  func.func @transform_2(%arg0: i32) -> (i32, i32) {
    %c0_i32 = arith.constant 0 : i32
    %c0_i32_0 = arith.constant 0 : i32
    %c0_i32_1 = arith.constant 0 : i32
    return %c0_i32, %c0_i32_0 : i32, i32
  }
  func.func @transform_3(%arg0: i32) -> (i32, i32) {
    %c0_i32 = arith.constant 0 : i32
    %c0_i32_0 = arith.constant 0 : i32
    %c0_i32_1 = arith.constant 0 : i32
    return %c0_i32, %c0_i32_0 : i32, i32
  }
  func.func @transform_4(%arg0: i32) -> (i32, i32) {
    %c0_i32 = arith.constant 0 : i32
    %c0_i32_0 = arith.constant 0 : i32
    %c0_i32_1 = arith.constant 0 : i32
    return %c0_i32, %c0_i32_0 : i32, i32
  }
  func.func @transform_5(%arg0: i32) -> (i32, i32) {
    %c0_i32 = arith.constant 0 : i32
    %c0_i32_0 = arith.constant 0 : i32
    %c0_i32_1 = arith.constant 0 : i32
    return %c0_i32, %c0_i32_0 : i32, i32
  }
  func.func @transform_6(%arg0: i32) -> (i32, i32) {
    %c0_i32 = arith.constant 0 : i32
    %c0_i32_0 = arith.constant 0 : i32
    %c0_i32_1 = arith.constant 0 : i32
    return %c0_i32, %c0_i32_0 : i32, i32
  }
  func.func @transform_7(%arg0: i32) -> (i32, i32) {
    %c0_i32 = arith.constant 0 : i32
    %c0_i32_0 = arith.constant 0 : i32
    %c0_i32_1 = arith.constant 0 : i32
    return %c0_i32, %c0_i32_0 : i32, i32
  }
  func.func @transform_8(%arg0: i32) -> (i32, i32) {
    %c0_i32 = arith.constant 0 : i32
    %c0_i32_0 = arith.constant 0 : i32
    %c0_i32_1 = arith.constant 0 : i32
    return %c0_i32, %c0_i32_0 : i32, i32
  }
  func.func @transform_9(%arg0: i32) -> (i32, i32) {
    %c0_i32 = arith.constant 0 : i32
    %c0_i32_0 = arith.constant 0 : i32
    %c0_i32_1 = arith.constant 0 : i32
    return %c0_i32, %c0_i32_0 : i32, i32
  }
  func.func @transform_10(%arg0: i32) -> (i32, i32) {
    %c0_i32 = arith.constant 0 : i32
    %c0_i32_0 = arith.constant 0 : i32
    %c0_i32_1 = arith.constant 0 : i32
    return %c0_i32, %c0_i32_0 : i32, i32
  }
  func.func @transform_11(%arg0: i32) -> (i32, i32) {
    %c0_i32 = arith.constant 0 : i32
    %c0_i32_0 = arith.constant 0 : i32
    %c0_i32_1 = arith.constant 0 : i32
    return %c0_i32, %c0_i32_0 : i32, i32
  }
}

</mosaic_0001>

<llo_original>
// kernel: feature_map_vec_field_forward.1
$region0: #{feature_map_vec_field_forward.1}
  #allocation0 [shape = 'u32[]', space=smem, size = 0x4, offset = 0x4, fixed_abs, tag = 'smem constant byte address 0x4 - core index']
  #allocation1 [shape = 'u32[72,128]{1,0:T(1,128)}', space=vmem, size = 0x9000, scoped, tag = 'internal scratch']
  %s0 = inlined_call_operand.vmem [shape: f32[256,128], index: 0, kind: input, shape index: {}]
  %s1 = inlined_call_operand.vmem [shape: f32[256,256], index: 1, kind: input, shape index: {}]
  %s2 = inlined_call_operand.vmem [shape: f32[128,128], index: 2, kind: input, shape index: {}]
  %s3 = inlined_call_operand.vmem [shape: f32[1,128], index: 3, kind: input, shape index: {}]
  %s4 = inlined_call_operand.vmem [shape: f32[128,128], index: 4, kind: input, shape index: {}]
  %s5 = inlined_call_operand.vmem [shape: f32[1,128], index: 5, kind: input, shape index: {}]
  %s6 = inlined_call_operand.vmem [shape: f32[1,128], index: 6, kind: input, shape index: {}]
  %s7 = inlined_call_operand.vmem [shape: f32[1,128], index: 7, kind: input, shape index: {}]
  %s8 = inlined_call_operand.vmem [shape: f32[128,128], index: 8, kind: input, shape index: {}]
  %s9 = inlined_call_operand.vmem [shape: f32[1,128], index: 9, kind: input, shape index: {}]
  %s10 = inlined_call_operand.vmem [shape: f32[128,128], index: 10, kind: input, shape index: {}]
  %s11 = inlined_call_operand.vmem [shape: f32[256,128], index: 11, kind: output, shape index: {}]
  %s12 = sld [smem:[#allocation0]]
  $region54: #{feature_map_vec_field_forward.1} parent=0
    _
  %s14 = ssub.s32 1, %s12
  %s15 = scalar_select 0, %s14, %s12
  // Predicated region
  $region2: #{feature_map_vec_field_forward.1} parent=0 // pred_check
    _
  $region3: #{feature_map_vec_field_forward.1} parent=0 // pred_check_branch
    %17 = sbr.rel (0) target = $region5
  $region4: #{feature_map_vec_field_forward.1} parent=0 // pred_region
    _
  $region5: #{feature_map_vec_field_forward.1} parent=0 // pred_fallthru
    _
  // Predicated region
  $region6: #{feature_map_vec_field_forward.1} parent=0 // pred_check
    _
  $region7: #{feature_map_vec_field_forward.1} parent=0 // pred_check_branch
    %19 = sbr.rel (0) target = $region9
  $region8: #{feature_map_vec_field_forward.1} parent=0 // pred_region
    _
  $region9: #{feature_map_vec_field_forward.1} parent=0 // pred_fallthru
    _
  // Predicated region
  $region10: #{feature_map_vec_field_forward.1} parent=0 // pred_check
    _
  $region11: #{feature_map_vec_field_forward.1} parent=0 // pred_check_branch
    %21 = sbr.rel (0) target = $region13
  $region12: #{feature_map_vec_field_forward.1} parent=0 // pred_region
    _
  $region13: #{feature_map_vec_field_forward.1} parent=0 // pred_fallthru
    _
  // Predicated region
  $region14: #{feature_map_vec_field_forward.1} parent=0 // pred_check
    _
  $region15: #{feature_map_vec_field_forward.1} parent=0 // pred_check_branch
    %23 = sbr.rel (0) target = $region17
  $region16: #{feature_map_vec_field_forward.1} parent=0 // pred_region
    _
  $region17: #{feature_map_vec_field_forward.1} parent=0 // pred_fallthru
    _
  // Predicated region
  $region18: #{feature_map_vec_field_forward.1} parent=0 // pred_check
    _
  $region19: #{feature_map_vec_field_forward.1} parent=0 // pred_check_branch
    %25 = sbr.rel (0) target = $region21
  $region20: #{feature_map_vec_field_forward.1} parent=0 // pred_region
    _
  $region21: #{feature_map_vec_field_forward.1} parent=0 // pred_fallthru
    _
  // Predicated region
  $region22: #{feature_map_vec_field_forward.1} parent=0 // pred_check
    _
  $region23: #{feature_map_vec_field_forward.1} parent=0 // pred_check_branch
    %27 = sbr.rel (0) target = $region25
  $region24: #{feature_map_vec_field_forward.1} parent=0 // pred_region
    _
  $region25: #{feature_map_vec_field_forward.1} parent=0 // pred_fallthru
    _
  // Predicated region
  $region26: #{feature_map_vec_field_forward.1} parent=0 // pred_check
    _
  $region27: #{feature_map_vec_field_forward.1} parent=0 // pred_check_branch
    %29 = sbr.rel (0) target = $region29
  $region28: #{feature_map_vec_field_forward.1} parent=0 // pred_region
    _
  $region29: #{feature_map_vec_field_forward.1} parent=0 // pred_fallthru
    _
  // Predicated region
  $region30: #{feature_map_vec_field_forward.1} parent=0 // pred_check
    _
  $region31: #{feature_map_vec_field_forward.1} parent=0 // pred_check_branch
    %31 = sbr.rel (0) target = $region33
  $region32: #{feature_map_vec_field_forward.1} parent=0 // pred_region
    _
  $region33: #{feature_map_vec_field_forward.1} parent=0 // pred_fallthru
    _
  // Predicated region
  $region34: #{feature_map_vec_field_forward.1} parent=0 // pred_check
    _
  $region35: #{feature_map_vec_field_forward.1} parent=0 // pred_check_branch
    %33 = sbr.rel (0) target = $region37
  $region36: #{feature_map_vec_field_forward.1} parent=0 // pred_region
    _
  $region37: #{feature_map_vec_field_forward.1} parent=0 // pred_fallthru
    _
  // Predicated region
  $region38: #{feature_map_vec_field_forward.1} parent=0 // pred_check
    _
  $region39: #{feature_map_vec_field_forward.1} parent=0 // pred_check_branch
    %35 = sbr.rel (0) target = $region41
  $region40: #{feature_map_vec_field_forward.1} parent=0 // pred_region
    _
  $region41: #{feature_map_vec_field_forward.1} parent=0 // pred_fallthru
    _
  // Predicated region
  $region42: #{feature_map_vec_field_forward.1} parent=0 // pred_check
    _
  $region43: #{feature_map_vec_field_forward.1} parent=0 // pred_check_branch
    %37 = sbr.rel (0) target = $region45
  $region44: #{feature_map_vec_field_forward.1} parent=0 // pred_region
    _
  $region45: #{feature_map_vec_field_forward.1} parent=0 // pred_fallthru
    _
  %v38 = vld [vmem:[%s0] sm:$0xff]
  %v39 = vld [vmem:[%s0 + $0x8] sm:$0xff]
  %v40 = vld [vmem:[%s0 + $0x10] sm:$0xff]
  %v41 = vld [vmem:[%s0 + $0x18] sm:$0xff]
  %v42 = vld [vmem:[%s0 + $0x20] sm:$0xff]
  %v43 = vld [vmem:[%s0 + $0x28] sm:$0xff]
  %v44 = vld [vmem:[%s0 + $0x30] sm:$0xff]
  %v45 = vld [vmem:[%s0 + $0x38] sm:$0xff]
  %v46 = vld [vmem:[%s0 + $0x40] sm:$0xff]
  %v47 = vld [vmem:[%s0 + $0x48] sm:$0xff]
  %v48 = vld [vmem:[%s0 + $0x50] sm:$0xff]
  %v49 = vld [vmem:[%s0 + $0x58] sm:$0xff]
  %v50 = vld [vmem:[%s0 + $0x60] sm:$0xff]
  %v51 = vld [vmem:[%s0 + $0x68] sm:$0xff]
  %v52 = vld [vmem:[%s0 + $0x70] sm:$0xff]
  %v53 = vld [vmem:[%s0 + $0x78] sm:$0xff]
  %v54 = vld [vmem:[%s0 + $0x80] sm:$0xff]
  %v55 = vld [vmem:[%s0 + $0x88] sm:$0xff]
  %v56 = vld [vmem:[%s0 + $0x90] sm:$0xff]
  %v57 = vld [vmem:[%s0 + $0x98] sm:$0xff]
  %v58 = vld [vmem:[%s0 + $0xa0] sm:$0xff]
  %v59 = vld [vmem:[%s0 + $0xa8] sm:$0xff]
  %v60 = vld [vmem:[%s0 + $0xb0] sm:$0xff]
  %v61 = vld [vmem:[%s0 + $0xb8] sm:$0xff]
  %v62 = vld [vmem:[%s0 + $0xc0] sm:$0xff]
  %v63 = vld [vmem:[%s0 + $0xc8] sm:$0xff]
  %v64 = vld [vmem:[%s0 + $0xd0] sm:$0xff]
  %v65 = vld [vmem:[%s0 + $0xd8] sm:$0xff]
  %v66 = vld [vmem:[%s0 + $0xe0] sm:$0xff]
  %v67 = vld [vmem:[%s0 + $0xe8] sm:$0xff]
  %v68 = vld [vmem:[%s0 + $0xf0] sm:$0xff]
  %v69 = vld [vmem:[%s0 + $0xf8] sm:$0xff]
  %v70 = vld [vmem:[%s1] sm:$0xff]
  %v71 = vld [vmem:[%s1 + $0x8] sm:$0xff]
  %v72 = vld [vmem:[%s1 + $0x10] sm:$0xff]
  %v73 = vld [vmem:[%s1 + $0x18] sm:$0xff]
  %v74 = vld [vmem:[%s1 + $0x20] sm:$0xff]
  %v75 = vld [vmem:[%s1 + $0x28] sm:$0xff]
  %v76 = vld [vmem:[%s1 + $0x30] sm:$0xff]
  %v77 = vld [vmem:[%s1 + $0x38] sm:$0xff]
  %v78 = vld [vmem:[%s1 + $0x40] sm:$0xff]
  %v79 = vld [vmem:[%s1 + $0x48] sm:$0xff]
  %v80 = vld [vmem:[%s1 + $0x50] sm:$0xff]
  %v81 = vld [vmem:[%s1 + $0x58] sm:$0xff]
  %v82 = vld [vmem:[%s1 + $0x60] sm:$0xff]
  %v83 = vld [vmem:[%s1 + $0x68] sm:$0xff]
  %v84 = vld [vmem:[%s1 + $0x70] sm:$0xff]
  %v85 = vld [vmem:[%s1 + $0x78] sm:$0xff]
  %v86 = vld [vmem:[%s1 + $0x80] sm:$0xff]
  %v87 = vld [vmem:[%s1 + $0x88] sm:$0xff]
  %v88 = vld [vmem:[%s1 + $0x90] sm:$0xff]
  %v89 = vld [vmem:[%s1 + $0x98] sm:$0xff]
  %v90 = vld [vmem:[%s1 + $0xa0] sm:$0xff]
  %v91 = vld [vmem:[%s1 + $0xa8] sm:$0xff]
  %v92 = vld [vmem:[%s1 + $0xb0] sm:$0xff]
  %v93 = vld [vmem:[%s1 + $0xb8] sm:$0xff]
  %v94 = vld [vmem:[%s1 + $0xc0] sm:$0xff]
  %v95 = vld [vmem:[%s1 + $0xc8] sm:$0xff]
  %v96 = vld [vmem:[%s1 + $0xd0] sm:$0xff]
  %v97 = vld [vmem:[%s1 + $0xd8] sm:$0xff]
  %v98 = vld [vmem:[%s1 + $0xe0] sm:$0xff]
  %v99 = vld [vmem:[%s1 + $0xe8] sm:$0xff]
  %v100 = vld [vmem:[%s1 + $0xf0] sm:$0xff]
  %v101 = vld [vmem:[%s1 + $0xf8] sm:$0xff]
  %v102 = vld [vmem:[%s1 + $0x100] sm:$0xff]
  %v103 = vld [vmem:[%s1 + $0x108] sm:$0xff]
  %v104 = vld [vmem:[%s1 + $0x110] sm:$0xff]
  %v105 = vld [vmem:[%s1 + $0x118] sm:$0xff]
  %v106 = vld [vmem:[%s1 + $0x120] sm:$0xff]
  %v107 = vld [vmem:[%s1 + $0x128] sm:$0xff]
  %v108 = vld [vmem:[%s1 + $0x130] sm:$0xff]
  %v109 = vld [vmem:[%s1 + $0x138] sm:$0xff]
  %v110 = vld [vmem:[%s1 + $0x140] sm:$0xff]
  %v111 = vld [vmem:[%s1 + $0x148] sm:$0xff]
  %v112 = vld [vmem:[%s1 + $0x150] sm:$0xff]
  %v113 = vld [vmem:[%s1 + $0x158] sm:$0xff]
  %v114 = vld [vmem:[%s1 + $0x160] sm:$0xff]
  %v115 = vld [vmem:[%s1 + $0x168] sm:$0xff]
  %v116 = vld [vmem:[%s1 + $0x170] sm:$0xff]
  %v117 = vld [vmem:[%s1 + $0x178] sm:$0xff]
  %v118 = vld [vmem:[%s1 + $0x180] sm:$0xff]
  %v119 = vld [vmem:[%s1 + $0x188] sm:$0xff]
  %v120 = vld [vmem:[%s1 + $0x190] sm:$0xff]
  %v121 = vld [vmem:[%s1 + $0x198] sm:$0xff]
  %v122 = vld [vmem:[%s1 + $0x1a0] sm:$0xff]
  %v123 = vld [vmem:[%s1 + $0x1a8] sm:$0xff]
  %v124 = vld [vmem:[%s1 + $0x1b0] sm:$0xff]
  %v125 = vld [vmem:[%s1 + $0x1b8] sm:$0xff]
  %v126 = vld [vmem:[%s1 + $0x1c0] sm:$0xff]
  %v127 = vld [vmem:[%s1 + $0x1c8] sm:$0xff]
  %v128 = vld [vmem:[%s1 + $0x1d0] sm:$0xff]
  %v129 = vld [vmem:[%s1 + $0x1d8] sm:$0xff]
  %v130 = vld [vmem:[%s1 + $0x1e0] sm:$0xff]
  %v131 = vld [vmem:[%s1 + $0x1e8] sm:$0xff]
  %v132 = vld [vmem:[%s1 + $0x1f0] sm:$0xff]
  %v133 = vld [vmem:[%s1 + $0x1f8] sm:$0xff]
  %v134 = vld [vmem:[%s2] sm:$0xff]
  %v135 = vld [vmem:[%s2 + $0x8] sm:$0xff]
  %v136 = vld [vmem:[%s2 + $0x10] sm:$0xff]
  %v137 = vld [vmem:[%s2 + $0x18] sm:$0xff]
  %v138 = vld [vmem:[%s2 + $0x20] sm:$0xff]
  %v139 = vld [vmem:[%s2 + $0x28] sm:$0xff]
  %v140 = vld [vmem:[%s2 + $0x30] sm:$0xff]
  %v141 = vld [vmem:[%s2 + $0x38] sm:$0xff]
  %v142 = vld [vmem:[%s2 + $0x40] sm:$0xff]
  %v143 = vld [vmem:[%s2 + $0x48] sm:$0xff]
  %v144 = vld [vmem:[%s2 + $0x50] sm:$0xff]
  %v145 = vld [vmem:[%s2 + $0x58] sm:$0xff]
  %v146 = vld [vmem:[%s2 + $0x60] sm:$0xff]
  %v147 = vld [vmem:[%s2 + $0x68] sm:$0xff]
  %v148 = vld [vmem:[%s2 + $0x70] sm:$0xff]
  %v149 = vld [vmem:[%s2 + $0x78] sm:$0xff]
  %v150 = vld [vmem:[%s3] sm:$0x1]
  %v152 = vperm.slane %v150, 0
  %154 = vmatpush.msra.mxu0 %v149
  %155 = vmatpush.msra.mxu0 %v148
  %156 = vmatpush.msra.mxu0 %v147
  %157 = vmatpush.msra.mxu0 %v146
  %158 = vmatpush.msra.mxu0 %v145
  %159 = vmatpush.msra.mxu0 %v144
  %160 = vmatpush.msra.mxu0 %v143
  %161 = vmatpush.msra.mxu0 %v142
  %162 = vmatpush.msra.mxu0 %v141
  %163 = vmatpush.msra.mxu0 %v140
  %164 = vmatpush.msra.mxu0 %v139
  %165 = vmatpush.msra.mxu0 %v138
  %166 = vmatpush.msra.mxu0 %v137
  %167 = vmatpush.msra.mxu0 %v136
  %168 = vmatpush.msra.mxu0 %v135
  %169 = vmatpush.msra.mxu0 %v134
  %170 = vmatmul.f32.gmra.mxu0 %v38
  %v171 = vpop.f32.mrf.mxu0
  %v172 = vadd.f32 %v152, %v171
  %173 = vmatmul.f32.gmra.mxu0 %v39
  %v174 = vpop.f32.mrf.mxu0
  %v175 = vadd.f32 %v152, %v174
  %176 = vmatmul.f32.gmra.mxu0 %v40
  %v177 = vpop.f32.mrf.mxu0
  %v178 = vadd.f32 %v152, %v177
  %179 = vmatmul.f32.gmra.mxu0 %v41
  %v180 = vpop.f32.mrf.mxu0
  %v181 = vadd.f32 %v152, %v180
  %182 = vmatmul.f32.gmra.mxu0 %v42
  %v183 = vpop.f32.mrf.mxu0
  %v184 = vadd.f32 %v152, %v183
  %185 = vmatmul.f32.gmra.mxu0 %v43
  %v186 = vpop.f32.mrf.mxu0
  %v187 = vadd.f32 %v152, %v186
  %188 = vmatmul.f32.gmra.mxu0 %v44
  %v189 = vpop.f32.mrf.mxu0
  %v190 = vadd.f32 %v152, %v189
  %191 = vmatmul.f32.gmra.mxu0 %v45
  %v192 = vpop.f32.mrf.mxu0
  %v193 = vadd.f32 %v152, %v192
  %194 = vmatmul.f32.gmra.mxu0 %v46
  %v195 = vpop.f32.mrf.mxu0
  %v196 = vadd.f32 %v152, %v195
  %197 = vmatmul.f32.gmra.mxu0 %v47
  %v198 = vpop.f32.mrf.mxu0
  %v199 = vadd.f32 %v152, %v198
  %200 = vmatmul.f32.gmra.mxu0 %v48
  %v201 = vpop.f32.mrf.mxu0
  %v202 = vadd.f32 %v152, %v201
  %203 = vmatmul.f32.gmra.mxu0 %v49
  %v204 = vpop.f32.mrf.mxu0
  %v205 = vadd.f32 %v152, %v204
  %206 = vmatmul.f32.gmra.mxu0 %v50
  %v207 = vpop.f32.mrf.mxu0
  %v208 = vadd.f32 %v152, %v207
  %209 = vmatmul.f32.gmra.mxu0 %v51
  %v210 = vpop.f32.mrf.mxu0
  %v211 = vadd.f32 %v152, %v210
  %212 = vmatmul.f32.gmra.mxu0 %v52
  %v213 = vpop.f32.mrf.mxu0
  %v214 = vadd.f32 %v152, %v213
  %215 = vmatmul.f32.gmra.mxu0 %v53
  %v216 = vpop.f32.mrf.mxu0
  %v217 = vadd.f32 %v152, %v216
  %218 = vmatmul.f32.gmra.mxu0 %v54
  %v219 = vpop.f32.mrf.mxu0
  %v220 = vadd.f32 %v152, %v219
  %221 = vmatmul.f32.gmra.mxu0 %v55
  %v222 = vpop.f32.mrf.mxu0
  %v223 = vadd.f32 %v152, %v222
  %224 = vmatmul.f32.gmra.mxu0 %v56
  %v225 = vpop.f32.mrf.mxu0
  %v226 = vadd.f32 %v152, %v225
  %227 = vmatmul.f32.gmra.mxu0 %v57
  %v228 = vpop.f32.mrf.mxu0
  %v229 = vadd.f32 %v152, %v228
  %230 = vmatmul.f32.gmra.mxu0 %v58
  %v231 = vpop.f32.mrf.mxu0
  %v232 = vadd.f32 %v152, %v231
  %233 = vmatmul.f32.gmra.mxu0 %v59
  %v234 = vpop.f32.mrf.mxu0
  %v235 = vadd.f32 %v152, %v234
  %236 = vmatmul.f32.gmra.mxu0 %v60
  %v237 = vpop.f32.mrf.mxu0
  %v238 = vadd.f32 %v152, %v237
  %239 = vmatmul.f32.gmra.mxu0 %v61
  %v240 = vpop.f32.mrf.mxu0
  %v241 = vadd.f32 %v152, %v240
  %242 = vmatmul.f32.gmra.mxu0 %v62
  %v243 = vpop.f32.mrf.mxu0
  %v244 = vadd.f32 %v152, %v243
  %245 = vmatmul.f32.gmra.mxu0 %v63
  %v246 = vpop.f32.mrf.mxu0
  %v247 = vadd.f32 %v152, %v246
  %248 = vmatmul.f32.gmra.mxu0 %v64
  %v249 = vpop.f32.mrf.mxu0
  %v250 = vadd.f32 %v152, %v249
  %251 = vmatmul.f32.gmra.mxu0 %v65
  %v252 = vpop.f32.mrf.mxu0
  %v253 = vadd.f32 %v152, %v252
  %254 = vmatmul.f32.gmra.mxu0 %v66
  %v255 = vpop.f32.mrf.mxu0
  %v256 = vadd.f32 %v152, %v255
  %257 = vmatmul.f32.gmra.mxu0 %v67
  %v258 = vpop.f32.mrf.mxu0
  %v259 = vadd.f32 %v152, %v258
  %260 = vmatmul.f32.gmra.mxu0 %v68
  %v261 = vpop.f32.mrf.mxu0
  %v262 = vadd.f32 %v152, %v261
  %263 = vmatmul.f32.gmra.mxu0 %v69
  %v264 = vpop.f32.mrf.mxu0
  %v265 = vadd.f32 %v152, %v264
  %266 = vdwg.mxu0
  %v267 = vtanh.pop %v172
  %v268 = vtanh.pop %v175
  %v269 = vtanh.pop %v178
  %v270 = vtanh.pop %v181
  %v271 = vtanh.pop %v184
  %v272 = vtanh.pop %v187
  %v273 = vtanh.pop %v190
  %v274 = vtanh.pop %v193
  %v275 = vtanh.pop %v196
  %v276 = vtanh.pop %v199
  %v277 = vtanh.pop %v202
  %v278 = vtanh.pop %v205
  %v279 = vtanh.pop %v208
  %v280 = vtanh.pop %v211
  %v281 = vtanh.pop %v214
  %v282 = vtanh.pop %v217
  %v283 = vtanh.pop %v220
  %v284 = vtanh.pop %v223
  %v285 = vtanh.pop %v226
  %v286 = vtanh.pop %v229
  %v287 = vtanh.pop %v232
  %v288 = vtanh.pop %v235
  %v289 = vtanh.pop %v238
  %v290 = vtanh.pop %v241
  %v291 = vtanh.pop %v244
  %v292 = vtanh.pop %v247
  %v293 = vtanh.pop %v250
  %v294 = vtanh.pop %v253
  %v295 = vtanh.pop %v256
  %v296 = vtanh.pop %v259
  %v297 = vtanh.pop %v262
  %v298 = vtanh.pop %v265
  %299 = vmatpush.msra.mxu0 %v282
  %300 = vmatpush.msra.mxu0 %v281
  %301 = vmatpush.msra.mxu0 %v280
  %302 = vmatpush.msra.mxu0 %v279
  %303 = vmatpush.msra.mxu0 %v278
  %304 = vmatpush.msra.mxu0 %v277
  %305 = vmatpush.msra.mxu0 %v276
  %306 = vmatpush.msra.mxu0 %v275
  %307 = vmatpush.msra.mxu0 %v274
  %308 = vmatpush.msra.mxu0 %v273
  %309 = vmatpush.msra.mxu0 %v272
  %310 = vmatpush.msra.mxu0 %v271
  %311 = vmatpush.msra.mxu0 %v270
  %312 = vmatpush.msra.mxu0 %v269
  %313 = vmatpush.msra.mxu0 %v268
  %314 = vmatpush.msra.mxu0 %v267
  %315 = vmatmul.f32.gmra.mxu0 %v70
  %v316 = vpop.f32.mrf.mxu0
  %v317 = vadd.f32 0.0, %v316
  %318 = vmatmul.f32.gmra.mxu0 %v72
  %v319 = vpop.f32.mrf.mxu0
  %v320 = vadd.f32 0.0, %v319
  %321 = vmatmul.f32.gmra.mxu0 %v74
  %v322 = vpop.f32.mrf.mxu0
  %v323 = vadd.f32 0.0, %v322
  %324 = vmatmul.f32.gmra.mxu0 %v76
  %v325 = vpop.f32.mrf.mxu0
  %v326 = vadd.f32 0.0, %v325
  %327 = vmatmul.f32.gmra.mxu0 %v78
  %v328 = vpop.f32.mrf.mxu0
  %v329 = vadd.f32 0.0, %v328
  %330 = vmatmul.f32.gmra.mxu0 %v80
  %v331 = vpop.f32.mrf.mxu0
  %v332 = vadd.f32 0.0, %v331
  %333 = vmatmul.f32.gmra.mxu0 %v82
  %v334 = vpop.f32.mrf.mxu0
  %v335 = vadd.f32 0.0, %v334
  %336 = vmatmul.f32.gmra.mxu0 %v84
  %v337 = vpop.f32.mrf.mxu0
  %v338 = vadd.f32 0.0, %v337
  %339 = vmatmul.f32.gmra.mxu0 %v86
  %v340 = vpop.f32.mrf.mxu0
  %v341 = vadd.f32 0.0, %v340
  %342 = vmatmul.f32.gmra.mxu0 %v88
  %v343 = vpop.f32.mrf.mxu0
  %v344 = vadd.f32 0.0, %v343
  %345 = vmatmul.f32.gmra.mxu0 %v90
  %v346 = vpop.f32.mrf.mxu0
  %v347 = vadd.f32 0.0, %v346
  %348 = vmatmul.f32.gmra.mxu0 %v92
  %v349 = vpop.f32.mrf.mxu0
  %v350 = vadd.f32 0.0, %v349
  %351 = vmatmul.f32.gmra.mxu0 %v94
  %v352 = vpop.f32.mrf.mxu0
  %v353 = vadd.f32 0.0, %v352
  %354 = vmatmul.f32.gmra.mxu0 %v96
  %v355 = vpop.f32.mrf.mxu0
  %v356 = vadd.f32 0.0, %v355
  %357 = vmatmul.f32.gmra.mxu0 %v98
  %v358 = vpop.f32.mrf.mxu0
  %v359 = vadd.f32 0.0, %v358
  %360 = vmatmul.f32.gmra.mxu0 %v100
  %v361 = vpop.f32.mrf.mxu0
  %v362 = vadd.f32 0.0, %v361
  %363 = vmatmul.f32.gmra.mxu0 %v102
  %v364 = vpop.f32.mrf.mxu0
  %v365 = vadd.f32 0.0, %v364
  %366 = vmatmul.f32.gmra.mxu0 %v104
  %v367 = vpop.f32.mrf.mxu0
  %v368 = vadd.f32 0.0, %v367
  %369 = vmatmul.f32.gmra.mxu0 %v106
  %v370 = vpop.f32.mrf.mxu0
  %v371 = vadd.f32 0.0, %v370
  %372 = vmatmul.f32.gmra.mxu0 %v108
  %v373 = vpop.f32.mrf.mxu0
  %v374 = vadd.f32 0.0, %v373
  %375 = vmatmul.f32.gmra.mxu0 %v110
  %v376 = vpop.f32.mrf.mxu0
  %v377 = vadd.f32 0.0, %v376
  %378 = vmatmul.f32.gmra.mxu0 %v112
  %v379 = vpop.f32.mrf.mxu0
  %v380 = vadd.f32 0.0, %v379
  %381 = vmatmul.f32.gmra.mxu0 %v114
  %v382 = vpop.f32.mrf.mxu0
  %v383 = vadd.f32 0.0, %v382
  %384 = vmatmul.f32.gmra.mxu0 %v116
  %v385 = vpop.f32.mrf.mxu0
  %v386 = vadd.f32 0.0, %v385
  %387 = vmatmul.f32.gmra.mxu0 %v118
  %v388 = vpop.f32.mrf.mxu0
  %v389 = vadd.f32 0.0, %v388
  %390 = vmatmul.f32.gmra.mxu0 %v120
  %v391 = vpop.f32.mrf.mxu0
  %v392 = vadd.f32 0.0, %v391
  %393 = vmatmul.f32.gmra.mxu0 %v122
  %v394 = vpop.f32.mrf.mxu0
  %v395 = vadd.f32 0.0, %v394
  %396 = vmatmul.f32.gmra.mxu0 %v124
  %v397 = vpop.f32.mrf.mxu0
  %v398 = vadd.f32 0.0, %v397
  %399 = vmatmul.f32.gmra.mxu0 %v126
  %v400 = vpop.f32.mrf.mxu0
  %v401 = vadd.f32 0.0, %v400
  %402 = vmatmul.f32.gmra.mxu0 %v128
  %v403 = vpop.f32.mrf.mxu0
  %v404 = vadd.f32 0.0, %v403
  %405 = vmatmul.f32.gmra.mxu0 %v130
  %v406 = vpop.f32.mrf.mxu0
  %v407 = vadd.f32 0.0, %v406
  %408 = vmatmul.f32.gmra.mxu0 %v132
  %v409 = vpop.f32.mrf.mxu0
  %v410 = vadd.f32 0.0, %v409
  %411 = vdwg.mxu0
  %412 = vmatpush.msra.mxu0 %v298
  %413 = vmatpush.msra.mxu0 %v297
  %414 = vmatpush.msra.mxu0 %v296
  %415 = vmatpush.msra.mxu0 %v295
  %416 = vmatpush.msra.mxu0 %v294
  %417 = vmatpush.msra.mxu0 %v293
  %418 = vmatpush.msra.mxu0 %v292
  %419 = vmatpush.msra.mxu0 %v291
  %420 = vmatpush.msra.mxu0 %v290
  %421 = vmatpush.msra.mxu0 %v289
  %422 = vmatpush.msra.mxu0 %v288
  %423 = vmatpush.msra.mxu0 %v287
  %424 = vmatpush.msra.mxu0 %v286
  %425 = vmatpush.msra.mxu0 %v285
  %426 = vmatpush.msra.mxu0 %v284
  %427 = vmatpush.msra.mxu0 %v283
  %428 = vmatmul.f32.gmra.mxu0 %v71
  %v429 = vpop.f32.mrf.mxu0
  %v430 = vadd.f32 %v317, %v429
  %431 = vmatmul.f32.gmra.mxu0 %v73
  %v432 = vpop.f32.mrf.mxu0
  %v433 = vadd.f32 %v320, %v432
  %434 = vmatmul.f32.gmra.mxu0 %v75
  %v435 = vpop.f32.mrf.mxu0
  %v436 = vadd.f32 %v323, %v435
  %437 = vmatmul.f32.gmra.mxu0 %v77
  %v438 = vpop.f32.mrf.mxu0
  %v439 = vadd.f32 %v326, %v438
  %440 = vmatmul.f32.gmra.mxu0 %v79
  %v441 = vpop.f32.mrf.mxu0
  %v442 = vadd.f32 %v329, %v441
  %443 = vmatmul.f32.gmra.mxu0 %v81
  %v444 = vpop.f32.mrf.mxu0
  %v445 = vadd.f32 %v332, %v444
  %446 = vmatmul.f32.gmra.mxu0 %v83
  %v447 = vpop.f32.mrf.mxu0
  %v448 = vadd.f32 %v335, %v447
  %449 = vmatmul.f32.gmra.mxu0 %v85
  %v450 = vpop.f32.mrf.mxu0
  %v451 = vadd.f32 %v338, %v450
  %452 = vmatmul.f32.gmra.mxu0 %v87
  %v453 = vpop.f32.mrf.mxu0
  %v454 = vadd.f32 %v341, %v453
  %455 = vmatmul.f32.gmra.mxu0 %v89
  %v456 = vpop.f32.mrf.mxu0
  %v457 = vadd.f32 %v344, %v456
  %458 = vmatmul.f32.gmra.mxu0 %v91
  %v459 = vpop.f32.mrf.mxu0
  %v460 = vadd.f32 %v347, %v459
  %461 = vmatmul.f32.gmra.mxu0 %v93
  %v462 = vpop.f32.mrf.mxu0
  %v463 = vadd.f32 %v350, %v462
  %464 = vmatmul.f32.gmra.mxu0 %v95
  %v465 = vpop.f32.mrf.mxu0
  %v466 = vadd.f32 %v353, %v465
  %467 = vmatmul.f32.gmra.mxu0 %v97
  %v468 = vpop.f32.mrf.mxu0
  %v469 = vadd.f32 %v356, %v468
  %470 = vmatmul.f32.gmra.mxu0 %v99
  %v471 = vpop.f32.mrf.mxu0
  %v472 = vadd.f32 %v359, %v471
  %473 = vmatmul.f32.gmra.mxu0 %v101
  %v474 = vpop.f32.mrf.mxu0
  %v475 = vadd.f32 %v362, %v474
  %476 = vmatmul.f32.gmra.mxu0 %v103
  %v477 = vpop.f32.mrf.mxu0
  %v478 = vadd.f32 %v365, %v477
  %479 = vmatmul.f32.gmra.mxu0 %v105
  %v480 = vpop.f32.mrf.mxu0
  %v481 = vadd.f32 %v368, %v480
  %482 = vmatmul.f32.gmra.mxu0 %v107
  %v483 = vpop.f32.mrf.mxu0
  %v484 = vadd.f32 %v371, %v483
  %485 = vmatmul.f32.gmra.mxu0 %v109
  %v486 = vpop.f32.mrf.mxu0
  %v487 = vadd.f32 %v374, %v486
  %488 = vmatmul.f32.gmra.mxu0 %v111
  %v489 = vpop.f32.mrf.mxu0
  %v490 = vadd.f32 %v377, %v489
  %491 = vmatmul.f32.gmra.mxu0 %v113
  %v492 = vpop.f32.mrf.mxu0
  %v493 = vadd.f32 %v380, %v492
  %494 = vmatmul.f32.gmra.mxu0 %v115
  %v495 = vpop.f32.mrf.mxu0
  %v496 = vadd.f32 %v383, %v495
  %497 = vmatmul.f32.gmra.mxu0 %v117
  %v498 = vpop.f32.mrf.mxu0
  %v499 = vadd.f32 %v386, %v498
  %500 = vmatmul.f32.gmra.mxu0 %v119
  %v501 = vpop.f32.mrf.mxu0
  %v502 = vadd.f32 %v389, %v501
  %503 = vmatmul.f32.gmra.mxu0 %v121
  %v504 = vpop.f32.mrf.mxu0
  %v505 = vadd.f32 %v392, %v504
  %506 = vmatmul.f32.gmra.mxu0 %v123
  %v507 = vpop.f32.mrf.mxu0
  %v508 = vadd.f32 %v395, %v507
  %509 = vmatmul.f32.gmra.mxu0 %v125
  %v510 = vpop.f32.mrf.mxu0
  %v511 = vadd.f32 %v398, %v510
  %512 = vmatmul.f32.gmra.mxu0 %v127
  %v513 = vpop.f32.mrf.mxu0
  %v514 = vadd.f32 %v401, %v513
  %515 = vmatmul.f32.gmra.mxu0 %v129
  %v516 = vpop.f32.mrf.mxu0
  %v517 = vadd.f32 %v404, %v516
  %518 = vmatmul.f32.gmra.mxu0 %v131
  %v519 = vpop.f32.mrf.mxu0
  %v520 = vadd.f32 %v407, %v519
  %521 = vmatmul.f32.gmra.mxu0 %v133
  %v522 = vpop.f32.mrf.mxu0
  %v523 = vadd.f32 %v410, %v522
  %524 = vdwg.mxu0
  %525 = vmatpush.msra.mxu0 %v475
  %526 = vmatpush.msra.mxu0 %v472
  %527 = vmatpush.msra.mxu0 %v469
  %528 = vmatpush.msra.mxu0 %v466
  %529 = vmatpush.msra.mxu0 %v463
  %530 = vmatpush.msra.mxu0 %v460
  %531 = vmatpush.msra.mxu0 %v457
  %532 = vmatpush.msra.mxu0 %v454
  %533 = vmatpush.msra.mxu0 %v451
  %534 = vmatpush.msra.mxu0 %v448
  %535 = vmatpush.msra.mxu0 %v445
  %536 = vmatpush.msra.mxu0 %v442
  %537 = vmatpush.msra.mxu0 %v439
  %538 = vmatpush.msra.mxu0 %v436
  %539 = vmatpush.msra.mxu0 %v433
  %540 = vmatpush.msra.mxu0 %v430
  %541 = vmatmul.f32.gmra.mxu0 %v70
  %v542 = vpop.f32.mrf.mxu0
  %v543 = vadd.f32 0.0, %v542
  %544 = vmatmul.f32.gmra.mxu0 %v72
  %v545 = vpop.f32.mrf.mxu0
  %v546 = vadd.f32 0.0, %v545
  %547 = vmatmul.f32.gmra.mxu0 %v74
  %v548 = vpop.f32.mrf.mxu0
  %v549 = vadd.f32 0.0, %v548
  %550 = vmatmul.f32.gmra.mxu0 %v76
  %v551 = vpop.f32.mrf.mxu0
  %v552 = vadd.f32 0.0, %v551
  %553 = vmatmul.f32.gmra.mxu0 %v78
  %v554 = vpop.f32.mrf.mxu0
  %v555 = vadd.f32 0.0, %v554
  %556 = vmatmul.f32.gmra.mxu0 %v80
  %v557 = vpop.f32.mrf.mxu0
  %v558 = vadd.f32 0.0, %v557
  %559 = vmatmul.f32.gmra.mxu0 %v82
  %v560 = vpop.f32.mrf.mxu0
  %v561 = vadd.f32 0.0, %v560
  %562 = vmatmul.f32.gmra.mxu0 %v84
  %v563 = vpop.f32.mrf.mxu0
  %v564 = vadd.f32 0.0, %v563
  %565 = vmatmul.f32.gmra.mxu0 %v86
  %v566 = vpop.f32.mrf.mxu0
  %v567 = vadd.f32 0.0, %v566
  %568 = vmatmul.f32.gmra.mxu0 %v88
  %v569 = vpop.f32.mrf.mxu0
  %v570 = vadd.f32 0.0, %v569
  %571 = vmatmul.f32.gmra.mxu0 %v90
  %v572 = vpop.f32.mrf.mxu0
  %v573 = vadd.f32 0.0, %v572
  %574 = vmatmul.f32.gmra.mxu0 %v92
  %v575 = vpop.f32.mrf.mxu0
  %v576 = vadd.f32 0.0, %v575
  %577 = vmatmul.f32.gmra.mxu0 %v94
  %v578 = vpop.f32.mrf.mxu0
  %v579 = vadd.f32 0.0, %v578
  %580 = vmatmul.f32.gmra.mxu0 %v96
  %v581 = vpop.f32.mrf.mxu0
  %v582 = vadd.f32 0.0, %v581
  %583 = vmatmul.f32.gmra.mxu0 %v98
  %v584 = vpop.f32.mrf.mxu0
  %v585 = vadd.f32 0.0, %v584
  %586 = vmatmul.f32.gmra.mxu0 %v100
  %v587 = vpop.f32.mrf.mxu0
  %v588 = vadd.f32 0.0, %v587
  %589 = vmatmul.f32.gmra.mxu0 %v102
  %v590 = vpop.f32.mrf.mxu0
  %v591 = vadd.f32 0.0, %v590
  %592 = vmatmul.f32.gmra.mxu0 %v104
  %v593 = vpop.f32.mrf.mxu0
  %v594 = vadd.f32 0.0, %v593
  %595 = vmatmul.f32.gmra.mxu0 %v106
  %v596 = vpop.f32.mrf.mxu0
  %v597 = vadd.f32 0.0, %v596
  %598 = vmatmul.f32.gmra.mxu0 %v108
  %v599 = vpop.f32.mrf.mxu0
  %v600 = vadd.f32 0.0, %v599
  %601 = vmatmul.f32.gmra.mxu0 %v110
  %v602 = vpop.f32.mrf.mxu0
  %v603 = vadd.f32 0.0, %v602
  %604 = vmatmul.f32.gmra.mxu0 %v112
  %v605 = vpop.f32.mrf.mxu0
  %v606 = vadd.f32 0.0, %v605
  %607 = vmatmul.f32.gmra.mxu0 %v114
  %v608 = vpop.f32.mrf.mxu0
  %v609 = vadd.f32 0.0, %v608
  %610 = vmatmul.f32.gmra.mxu0 %v116
  %v611 = vpop.f32.mrf.mxu0
  %v612 = vadd.f32 0.0, %v611
  %613 = vmatmul.f32.gmra.mxu0 %v118
  %v614 = vpop.f32.mrf.mxu0
  %v615 = vadd.f32 0.0, %v614
  %616 = vmatmul.f32.gmra.mxu0 %v120
  %v617 = vpop.f32.mrf.mxu0
  %v618 = vadd.f32 0.0, %v617
  %619 = vmatmul.f32.gmra.mxu0 %v122
  %v620 = vpop.f32.mrf.mxu0
  %v621 = vadd.f32 0.0, %v620
  %622 = vmatmul.f32.gmra.mxu0 %v124
  %v623 = vpop.f32.mrf.mxu0
  %v624 = vadd.f32 0.0, %v623
  %625 = vmatmul.f32.gmra.mxu0 %v126
  %v626 = vpop.f32.mrf.mxu0
  %v627 = vadd.f32 0.0, %v626
  %628 = vmatmul.f32.gmra.mxu0 %v128
  %v629 = vpop.f32.mrf.mxu0
  %v630 = vadd.f32 0.0, %v629
  %631 = vmatmul.f32.gmra.mxu0 %v130
  %v632 = vpop.f32.mrf.mxu0
  %v633 = vadd.f32 0.0, %v632
  %634 = vmatmul.f32.gmra.mxu0 %v132
  %v635 = vpop.f32.mrf.mxu0
  %v636 = vadd.f32 0.0, %v635
  %637 = vdwg.mxu0
  %638 = vmatpush.msra.mxu0 %v523
  %639 = vmatpush.msra.mxu0 %v520
  %640 = vmatpush.msra.mxu0 %v517
  %641 = vmatpush.msra.mxu0 %v514
  %642 = vmatpush.msra.mxu0 %v511
  %643 = vmatpush.msra.mxu0 %v508
  %644 = vmatpush.msra.mxu0 %v505
  %645 = vmatpush.msra.mxu0 %v502
  %646 = vmatpush.msra.mxu0 %v499
  %647 = vmatpush.msra.mxu0 %v496
  %648 = vmatpush.msra.mxu0 %v493
  %649 = vmatpush.msra.mxu0 %v490
  %650 = vmatpush.msra.mxu0 %v487
  %651 = vmatpush.msra.mxu0 %v484
  %652 = vmatpush.msra.mxu0 %v481
  %653 = vmatpush.msra.mxu0 %v478
  %654 = vmatmul.f32.gmra.mxu0 %v71
  %v655 = vpop.f32.mrf.mxu0
  %v656 = vadd.f32 %v543, %v655
  %657 = vmatmul.f32.gmra.mxu0 %v73
  %v658 = vpop.f32.mrf.mxu0
  %v659 = vadd.f32 %v546, %v658
  %660 = vmatmul.f32.gmra.mxu0 %v75
  %v661 = vpop.f32.mrf.mxu0
  %v662 = vadd.f32 %v549, %v661
  %663 = vmatmul.f32.gmra.mxu0 %v77
  %v664 = vpop.f32.mrf.mxu0
  %v665 = vadd.f32 %v552, %v664
  %666 = vmatmul.f32.gmra.mxu0 %v79
  %v667 = vpop.f32.mrf.mxu0
  %v668 = vadd.f32 %v555, %v667
  %669 = vmatmul.f32.gmra.mxu0 %v81
  %v670 = vpop.f32.mrf.mxu0
  %v671 = vadd.f32 %v558, %v670
  %672 = vmatmul.f32.gmra.mxu0 %v83
  %v673 = vpop.f32.mrf.mxu0
  %v674 = vadd.f32 %v561, %v673
  %675 = vmatmul.f32.gmra.mxu0 %v85
  %v676 = vpop.f32.mrf.mxu0
  %v677 = vadd.f32 %v564, %v676
  %678 = vmatmul.f32.gmra.mxu0 %v87
  %v679 = vpop.f32.mrf.mxu0
  %v680 = vadd.f32 %v567, %v679
  %681 = vmatmul.f32.gmra.mxu0 %v89
  %v682 = vpop.f32.mrf.mxu0
  %v683 = vadd.f32 %v570, %v682
  %684 = vmatmul.f32.gmra.mxu0 %v91
  %v685 = vpop.f32.mrf.mxu0
  %v686 = vadd.f32 %v573, %v685
  %687 = vmatmul.f32.gmra.mxu0 %v93
  %v688 = vpop.f32.mrf.mxu0
  %v689 = vadd.f32 %v576, %v688
  %690 = vmatmul.f32.gmra.mxu0 %v95
  %v691 = vpop.f32.mrf.mxu0
  %v692 = vadd.f32 %v579, %v691
  %693 = vmatmul.f32.gmra.mxu0 %v97
  %v694 = vpop.f32.mrf.mxu0
  %v695 = vadd.f32 %v582, %v694
  %696 = vmatmul.f32.gmra.mxu0 %v99
  %v697 = vpop.f32.mrf.mxu0
  %v698 = vadd.f32 %v585, %v697
  %699 = vmatmul.f32.gmra.mxu0 %v101
  %v700 = vpop.f32.mrf.mxu0
  %v701 = vadd.f32 %v588, %v700
  %702 = vmatmul.f32.gmra.mxu0 %v103
  %v703 = vpop.f32.mrf.mxu0
  %v704 = vadd.f32 %v591, %v703
  %705 = vmatmul.f32.gmra.mxu0 %v105
  %v706 = vpop.f32.mrf.mxu0
  %v707 = vadd.f32 %v594, %v706
  %708 = vmatmul.f32.gmra.mxu0 %v107
  %v709 = vpop.f32.mrf.mxu0
  %v710 = vadd.f32 %v597, %v709
  %711 = vmatmul.f32.gmra.mxu0 %v109
  %v712 = vpop.f32.mrf.mxu0
  %v713 = vadd.f32 %v600, %v712
  %714 = vmatmul.f32.gmra.mxu0 %v111
  %v715 = vpop.f32.mrf.mxu0
  %v716 = vadd.f32 %v603, %v715
  %717 = vmatmul.f32.gmra.mxu0 %v113
  %v718 = vpop.f32.mrf.mxu0
  %v719 = vadd.f32 %v606, %v718
  %720 = vmatmul.f32.gmra.mxu0 %v115
  %v721 = vpop.f32.mrf.mxu0
  %v722 = vadd.f32 %v609, %v721
  %723 = vmatmul.f32.gmra.mxu0 %v117
  %v724 = vpop.f32.mrf.mxu0
  %v725 = vadd.f32 %v612, %v724
  %726 = vmatmul.f32.gmra.mxu0 %v119
  %v727 = vpop.f32.mrf.mxu0
  %v728 = vadd.f32 %v615, %v727
  %729 = vmatmul.f32.gmra.mxu0 %v121
  %v730 = vpop.f32.mrf.mxu0
  %v731 = vadd.f32 %v618, %v730
  %732 = vmatmul.f32.gmra.mxu0 %v123
  %v733 = vpop.f32.mrf.mxu0
  %v734 = vadd.f32 %v621, %v733
  %735 = vmatmul.f32.gmra.mxu0 %v125
  %v736 = vpop.f32.mrf.mxu0
  %v737 = vadd.f32 %v624, %v736
  %738 = vmatmul.f32.gmra.mxu0 %v127
  %v739 = vpop.f32.mrf.mxu0
  %v740 = vadd.f32 %v627, %v739
  %741 = vmatmul.f32.gmra.mxu0 %v129
  %v742 = vpop.f32.mrf.mxu0
  %v743 = vadd.f32 %v630, %v742
  %744 = vmatmul.f32.gmra.mxu0 %v131
  %v745 = vpop.f32.mrf.mxu0
  %v746 = vadd.f32 %v633, %v745
  %747 = vmatmul.f32.gmra.mxu0 %v133
  %v748 = vpop.f32.mrf.mxu0
  %v749 = vadd.f32 %v636, %v748
  %750 = vdwg.mxu0
  %v751 = vld [vmem:[%s4] sm:$0xff]
  %v752 = vld [vmem:[%s4 + $0x8] sm:$0xff]
  %v753 = vld [vmem:[%s4 + $0x10] sm:$0xff]
  %v754 = vld [vmem:[%s4 + $0x18] sm:$0xff]
  %v755 = vld [vmem:[%s4 + $0x20] sm:$0xff]
  %v756 = vld [vmem:[%s4 + $0x28] sm:$0xff]
  %v757 = vld [vmem:[%s4 + $0x30] sm:$0xff]
  %v758 = vld [vmem:[%s4 + $0x38] sm:$0xff]
  %v759 = vld [vmem:[%s4 + $0x40] sm:$0xff]
  %v760 = vld [vmem:[%s4 + $0x48] sm:$0xff]
  %v761 = vld [vmem:[%s4 + $0x50] sm:$0xff]
  %v762 = vld [vmem:[%s4 + $0x58] sm:$0xff]
  %v763 = vld [vmem:[%s4 + $0x60] sm:$0xff]
  %v764 = vld [vmem:[%s4 + $0x68] sm:$0xff]
  %v765 = vld [vmem:[%s4 + $0x70] sm:$0xff]
  %v766 = vld [vmem:[%s4 + $0x78] sm:$0xff]
  %v767 = vld [vmem:[%s5] sm:$0x1]
  %v769 = vperm.slane %v767, 0
  %771 = vmatpush.msra.mxu0 %v766
  %772 = vmatpush.msra.mxu0 %v765
  %773 = vmatpush.msra.mxu0 %v764
  %774 = vmatpush.msra.mxu0 %v763
  %775 = vmatpush.msra.mxu0 %v762
  %776 = vmatpush.msra.mxu0 %v761
  %777 = vmatpush.msra.mxu0 %v760
  %778 = vmatpush.msra.mxu0 %v759
  %779 = vmatpush.msra.mxu0 %v758
  %780 = vmatpush.msra.mxu0 %v757
  %781 = vmatpush.msra.mxu0 %v756
  %782 = vmatpush.msra.mxu0 %v755
  %783 = vmatpush.msra.mxu0 %v754
  %784 = vmatpush.msra.mxu0 %v753
  %785 = vmatpush.msra.mxu0 %v752
  %786 = vmatpush.msra.mxu0 %v751
  %787 = vmatmul.f32.gmra.mxu0 %v656
  %v788 = vpop.f32.mrf.mxu0
  %v789 = vadd.f32 %v769, %v788
  %790 = vmatmul.f32.gmra.mxu0 %v659
  %v791 = vpop.f32.mrf.mxu0
  %v792 = vadd.f32 %v769, %v791
  %793 = vmatmul.f32.gmra.mxu0 %v662
  %v794 = vpop.f32.mrf.mxu0
  %v795 = vadd.f32 %v769, %v794
  %796 = vmatmul.f32.gmra.mxu0 %v665
  %v797 = vpop.f32.mrf.mxu0
  %v798 = vadd.f32 %v769, %v797
  %799 = vmatmul.f32.gmra.mxu0 %v668
  %v800 = vpop.f32.mrf.mxu0
  %v801 = vadd.f32 %v769, %v800
  %802 = vmatmul.f32.gmra.mxu0 %v671
  %v803 = vpop.f32.mrf.mxu0
  %v804 = vadd.f32 %v769, %v803
  %805 = vmatmul.f32.gmra.mxu0 %v674
  %v806 = vpop.f32.mrf.mxu0
  %v807 = vadd.f32 %v769, %v806
  %808 = vmatmul.f32.gmra.mxu0 %v677
  %v809 = vpop.f32.mrf.mxu0
  %v810 = vadd.f32 %v769, %v809
  %811 = vmatmul.f32.gmra.mxu0 %v680
  %v812 = vpop.f32.mrf.mxu0
  %v813 = vadd.f32 %v769, %v812
  %814 = vmatmul.f32.gmra.mxu0 %v683
  %v815 = vpop.f32.mrf.mxu0
  %v816 = vadd.f32 %v769, %v815
  %817 = vmatmul.f32.gmra.mxu0 %v686
  %v818 = vpop.f32.mrf.mxu0
  %v819 = vadd.f32 %v769, %v818
  %820 = vmatmul.f32.gmra.mxu0 %v689
  %v821 = vpop.f32.mrf.mxu0
  %v822 = vadd.f32 %v769, %v821
  %823 = vmatmul.f32.gmra.mxu0 %v692
  %v824 = vpop.f32.mrf.mxu0
  %v825 = vadd.f32 %v769, %v824
  %826 = vmatmul.f32.gmra.mxu0 %v695
  %v827 = vpop.f32.mrf.mxu0
  %v828 = vadd.f32 %v769, %v827
  %829 = vmatmul.f32.gmra.mxu0 %v698
  %v830 = vpop.f32.mrf.mxu0
  %v831 = vadd.f32 %v769, %v830
  %832 = vmatmul.f32.gmra.mxu0 %v701
  %v833 = vpop.f32.mrf.mxu0
  %v834 = vadd.f32 %v769, %v833
  %835 = vmatmul.f32.gmra.mxu0 %v704
  %v836 = vpop.f32.mrf.mxu0
  %v837 = vadd.f32 %v769, %v836
  %838 = vmatmul.f32.gmra.mxu0 %v707
  %v839 = vpop.f32.mrf.mxu0
  %v840 = vadd.f32 %v769, %v839
  %841 = vmatmul.f32.gmra.mxu0 %v710
  %v842 = vpop.f32.mrf.mxu0
  %v843 = vadd.f32 %v769, %v842
  %844 = vmatmul.f32.gmra.mxu0 %v713
  %v845 = vpop.f32.mrf.mxu0
  %v846 = vadd.f32 %v769, %v845
  %847 = vmatmul.f32.gmra.mxu0 %v716
  %v848 = vpop.f32.mrf.mxu0
  %v849 = vadd.f32 %v769, %v848
  %850 = vmatmul.f32.gmra.mxu0 %v719
  %v851 = vpop.f32.mrf.mxu0
  %v852 = vadd.f32 %v769, %v851
  %853 = vmatmul.f32.gmra.mxu0 %v722
  %v854 = vpop.f32.mrf.mxu0
  %v855 = vadd.f32 %v769, %v854
  %856 = vmatmul.f32.gmra.mxu0 %v725
  %v857 = vpop.f32.mrf.mxu0
  %v858 = vadd.f32 %v769, %v857
  %859 = vmatmul.f32.gmra.mxu0 %v728
  %v860 = vpop.f32.mrf.mxu0
  %v861 = vadd.f32 %v769, %v860
  %862 = vmatmul.f32.gmra.mxu0 %v731
  %v863 = vpop.f32.mrf.mxu0
  %v864 = vadd.f32 %v769, %v863
  %865 = vmatmul.f32.gmra.mxu0 %v734
  %v866 = vpop.f32.mrf.mxu0
  %v867 = vadd.f32 %v769, %v866
  %868 = vmatmul.f32.gmra.mxu0 %v737
  %v869 = vpop.f32.mrf.mxu0
  %v870 = vadd.f32 %v769, %v869
  %871 = vmatmul.f32.gmra.mxu0 %v740
  %v872 = vpop.f32.mrf.mxu0
  %v873 = vadd.f32 %v769, %v872
  %874 = vmatmul.f32.gmra.mxu0 %v743
  %v875 = vpop.f32.mrf.mxu0
  %v876 = vadd.f32 %v769, %v875
  %877 = vmatmul.f32.gmra.mxu0 %v746
  %v878 = vpop.f32.mrf.mxu0
  %v879 = vadd.f32 %v769, %v878
  %880 = vmatmul.f32.gmra.mxu0 %v749
  %v881 = vpop.f32.mrf.mxu0
  %v882 = vadd.f32 %v769, %v881
  %883 = vdwg.mxu0
  %vm884 = vcmp.gt.f32.partialorder %v789, 0.0
  %vm885 = vcmp.gt.f32.partialorder %v792, 0.0
  %vm886 = vcmp.gt.f32.partialorder %v795, 0.0
  %vm887 = vcmp.gt.f32.partialorder %v798, 0.0
  %vm888 = vcmp.gt.f32.partialorder %v801, 0.0
  %vm889 = vcmp.gt.f32.partialorder %v804, 0.0
  %vm890 = vcmp.gt.f32.partialorder %v807, 0.0
  %vm891 = vcmp.gt.f32.partialorder %v810, 0.0
  %vm892 = vcmp.gt.f32.partialorder %v813, 0.0
  %vm893 = vcmp.gt.f32.partialorder %v816, 0.0
  %vm894 = vcmp.gt.f32.partialorder %v819, 0.0
  %vm895 = vcmp.gt.f32.partialorder %v822, 0.0
  %vm896 = vcmp.gt.f32.partialorder %v825, 0.0
  %vm897 = vcmp.gt.f32.partialorder %v828, 0.0
  %vm898 = vcmp.gt.f32.partialorder %v831, 0.0
  %vm899 = vcmp.gt.f32.partialorder %v834, 0.0
  %vm900 = vcmp.gt.f32.partialorder %v837, 0.0
  %vm901 = vcmp.gt.f32.partialorder %v840, 0.0
  %vm902 = vcmp.gt.f32.partialorder %v843, 0.0
  %vm903 = vcmp.gt.f32.partialorder %v846, 0.0
  %vm904 = vcmp.gt.f32.partialorder %v849, 0.0
  %vm905 = vcmp.gt.f32.partialorder %v852, 0.0
  %vm906 = vcmp.gt.f32.partialorder %v855, 0.0
  %vm907 = vcmp.gt.f32.partialorder %v858, 0.0
  %vm908 = vcmp.gt.f32.partialorder %v861, 0.0
  %vm909 = vcmp.gt.f32.partialorder %v864, 0.0
  %vm910 = vcmp.gt.f32.partialorder %v867, 0.0
  %vm911 = vcmp.gt.f32.partialorder %v870, 0.0
  %vm912 = vcmp.gt.f32.partialorder %v873, 0.0
  %vm913 = vcmp.gt.f32.partialorder %v876, 0.0
  %vm914 = vcmp.gt.f32.partialorder %v879, 0.0
  %vm915 = vcmp.gt.f32.partialorder %v882, 0.0
  %v916 = vmul.f32 %v789, 0.5
  %v917 = vmul.f32 %v792, 0.5
  %v918 = vmul.f32 %v795, 0.5
  %v919 = vmul.f32 %v798, 0.5
  %v920 = vmul.f32 %v801, 0.5
  %v921 = vmul.f32 %v804, 0.5
  %v922 = vmul.f32 %v807, 0.5
  %v923 = vmul.f32 %v810, 0.5
  %v924 = vmul.f32 %v813, 0.5
  %v925 = vmul.f32 %v816, 0.5
  %v926 = vmul.f32 %v819, 0.5
  %v927 = vmul.f32 %v822, 0.5
  %v928 = vmul.f32 %v825, 0.5
  %v929 = vmul.f32 %v828, 0.5
  %v930 = vmul.f32 %v831, 0.5
  %v931 = vmul.f32 %v834, 0.5
  %v932 = vmul.f32 %v837, 0.5
  %v933 = vmul.f32 %v840, 0.5
  %v934 = vmul.f32 %v843, 0.5
  %v935 = vmul.f32 %v846, 0.5
  %v936 = vmul.f32 %v849, 0.5
  %v937 = vmul.f32 %v852, 0.5
  %v938 = vmul.f32 %v855, 0.5
  %v939 = vmul.f32 %v858, 0.5
  %v940 = vmul.f32 %v861, 0.5
  %v941 = vmul.f32 %v864, 0.5
  %v942 = vmul.f32 %v867, 0.5
  %v943 = vmul.f32 %v870, 0.5
  %v944 = vmul.f32 %v873, 0.5
  %v945 = vmul.f32 %v876, 0.5
  %v946 = vmul.f32 %v879, 0.5
  %v947 = vmul.f32 %v882, 0.5
  %v948 = vsel %vm884, %v789, %v916
  %v949 = vsel %vm885, %v792, %v917
  %v950 = vsel %vm886, %v795, %v918
  %v951 = vsel %vm887, %v798, %v919
  %v952 = vsel %vm888, %v801, %v920
  %v953 = vsel %vm889, %v804, %v921
  %v954 = vsel %vm890, %v807, %v922
  %v955 = vsel %vm891, %v810, %v923
  %v956 = vsel %vm892, %v813, %v924
  %v957 = vsel %vm893, %v816, %v925
  %v958 = vsel %vm894, %v819, %v926
  %v959 = vsel %vm895, %v822, %v927
  %v960 = vsel %vm896, %v825, %v928
  %v961 = vsel %vm897, %v828, %v929
  %v962 = vsel %vm898, %v831, %v930
  %v963 = vsel %vm899, %v834, %v931
  %v964 = vsel %vm900, %v837, %v932
  %v965 = vsel %vm901, %v840, %v933
  %v966 = vsel %vm902, %v843, %v934
  %v967 = vsel %vm903, %v846, %v935
  %v968 = vsel %vm904, %v849, %v936
  %v969 = vsel %vm905, %v852, %v937
  %v970 = vsel %vm906, %v855, %v938
  %v971 = vsel %vm907, %v858, %v939
  %v972 = vsel %vm908, %v861, %v940
  %v973 = vsel %vm909, %v864, %v941
  %v974 = vsel %vm910, %v867, %v942
  %v975 = vsel %vm911, %v870, %v943
  %v976 = vsel %vm912, %v873, %v944
  %v977 = vsel %vm913, %v876, %v945
  %v978 = vsel %vm914, %v879, %v946
  %v979 = vsel %vm915, %v882, %v947
  %v980 = vlaneseq
  %v981 = vshrl.u32 %v980, 7
  %v982 = vadd.s32 %v981, 8
  %v983 = vadd.s32 %v981, 16
  %v984 = vadd.s32 %v981, 24
  %v985 = vadd.s32 %v981, 32
  %v986 = vadd.s32 %v981, 40
  %v987 = vadd.s32 %v981, 48
  %v988 = vadd.s32 %v981, 56
  %v989 = vadd.s32 %v981, 64
  %v990 = vadd.s32 %v981, 72
  %v991 = vadd.s32 %v981, 80
  %v992 = vadd.s32 %v981, 88
  %v993 = vadd.s32 %v981, 96
  %v994 = vadd.s32 %v981, 104
  %v995 = vadd.s32 %v981, 112
  %v996 = vadd.s32 %v981, 120
  %v997 = vadd.s32 %v981, 128
  %v998 = vadd.s32 %v981, 136
  %v999 = vadd.s32 %v981, 144
  %v1000 = vadd.s32 %v981, 152
  %v1001 = vadd.s32 %v981, 160
  %v1002 = vadd.s32 %v981, 168
  %v1003 = vadd.s32 %v981, 176
  %v1004 = vadd.s32 %v981, 184
  %v1005 = vadd.s32 %v981, 192
  %v1006 = vadd.s32 %v981, 200
  %v1007 = vadd.s32 %v981, 208
  %v1008 = vadd.s32 %v981, 216
  %v1009 = vadd.s32 %v981, 224
  %v1010 = vadd.s32 %v981, 232
  %v1011 = vadd.s32 %v981, 240
  %v1012 = vadd.s32 %v981, 248
  %vm1013 = vcmp.lt.s32.totalorder %v981, 200
  %vm1014 = vcmp.lt.s32.totalorder %v982, 200
  %vm1015 = vcmp.lt.s32.totalorder %v983, 200
  %vm1016 = vcmp.lt.s32.totalorder %v984, 200
  %vm1017 = vcmp.lt.s32.totalorder %v985, 200
  %vm1018 = vcmp.lt.s32.totalorder %v986, 200
  %vm1019 = vcmp.lt.s32.totalorder %v987, 200
  %vm1020 = vcmp.lt.s32.totalorder %v988, 200
  %vm1021 = vcmp.lt.s32.totalorder %v989, 200
  %vm1022 = vcmp.lt.s32.totalorder %v990, 200
  %vm1023 = vcmp.lt.s32.totalorder %v991, 200
  %vm1024 = vcmp.lt.s32.totalorder %v992, 200
  %vm1025 = vcmp.lt.s32.totalorder %v993, 200
  %vm1026 = vcmp.lt.s32.totalorder %v994, 200
  %vm1027 = vcmp.lt.s32.totalorder %v995, 200
  %vm1028 = vcmp.lt.s32.totalorder %v996, 200
  %vm1029 = vcmp.lt.s32.totalorder %v997, 200
  %vm1030 = vcmp.lt.s32.totalorder %v998, 200
  %vm1031 = vcmp.lt.s32.totalorder %v999, 200
  %vm1032 = vcmp.lt.s32.totalorder %v1000, 200
  %vm1033 = vcmp.lt.s32.totalorder %v1001, 200
  %vm1034 = vcmp.lt.s32.totalorder %v1002, 200
  %vm1035 = vcmp.lt.s32.totalorder %v1003, 200
  %vm1036 = vcmp.lt.s32.totalorder %v1004, 200
  %vm1037 = vcmp.lt.s32.totalorder %v1005, 200
  %vm1038 = vcmp.lt.s32.totalorder %v1006, 200
  %vm1039 = vcmp.lt.s32.totalorder %v1007, 200
  %vm1040 = vcmp.lt.s32.totalorder %v1008, 200
  %vm1041 = vcmp.lt.s32.totalorder %v1009, 200
  %vm1042 = vcmp.lt.s32.totalorder %v1010, 200
  %vm1043 = vcmp.lt.s32.totalorder %v1011, 200
  %vm1044 = vcmp.lt.s32.totalorder %v1012, 200
  %v1045 = vsel %vm1013, 1, 0
  %v1046 = vsel %vm1014, 1, 0
  %v1047 = vsel %vm1015, 1, 0
  %v1048 = vsel %vm1016, 1, 0
  %v1049 = vsel %vm1017, 1, 0
  %v1050 = vsel %vm1018, 1, 0
  %v1051 = vsel %vm1019, 1, 0
  %v1052 = vsel %vm1020, 1, 0
  %v1053 = vsel %vm1021, 1, 0
  %v1054 = vsel %vm1022, 1, 0
  %v1055 = vsel %vm1023, 1, 0
  %v1056 = vsel %vm1024, 1, 0
  %v1057 = vsel %vm1025, 1, 0
  %v1058 = vsel %vm1026, 1, 0
  %v1059 = vsel %vm1027, 1, 0
  %v1060 = vsel %vm1028, 1, 0
  %v1061 = vsel %vm1029, 1, 0
  %v1062 = vsel %vm1030, 1, 0
  %v1063 = vsel %vm1031, 1, 0
  %v1064 = vsel %vm1032, 1, 0
  %v1065 = vsel %vm1033, 1, 0
  %v1066 = vsel %vm1034, 1, 0
  %v1067 = vsel %vm1035, 1, 0
  %v1068 = vsel %vm1036, 1, 0
  %v1069 = vsel %vm1037, 1, 0
  %v1070 = vsel %vm1038, 1, 0
  %v1071 = vsel %vm1039, 1, 0
  %v1072 = vsel %vm1040, 1, 0
  %v1073 = vsel %vm1041, 1, 0
  %v1074 = vsel %vm1042, 1, 0
  %v1075 = vsel %vm1043, 1, 0
  %v1076 = vsel %vm1044, 1, 0
  %vm1077 = vcmp.eq.s32.totalorder %v1045, 1
  %vm1078 = vcmp.eq.s32.totalorder %v1046, 1
  %vm1079 = vcmp.eq.s32.totalorder %v1047, 1
  %vm1080 = vcmp.eq.s32.totalorder %v1048, 1
  %vm1081 = vcmp.eq.s32.totalorder %v1049, 1
  %vm1082 = vcmp.eq.s32.totalorder %v1050, 1
  %vm1083 = vcmp.eq.s32.totalorder %v1051, 1
  %vm1084 = vcmp.eq.s32.totalorder %v1052, 1
  %vm1085 = vcmp.eq.s32.totalorder %v1053, 1
  %vm1086 = vcmp.eq.s32.totalorder %v1054, 1
  %vm1087 = vcmp.eq.s32.totalorder %v1055, 1
  %vm1088 = vcmp.eq.s32.totalorder %v1056, 1
  %vm1089 = vcmp.eq.s32.totalorder %v1057, 1
  %vm1090 = vcmp.eq.s32.totalorder %v1058, 1
  %vm1091 = vcmp.eq.s32.totalorder %v1059, 1
  %vm1092 = vcmp.eq.s32.totalorder %v1060, 1
  %vm1093 = vcmp.eq.s32.totalorder %v1061, 1
  %vm1094 = vcmp.eq.s32.totalorder %v1062, 1
  %vm1095 = vcmp.eq.s32.totalorder %v1063, 1
  %vm1096 = vcmp.eq.s32.totalorder %v1064, 1
  %vm1097 = vcmp.eq.s32.totalorder %v1065, 1
  %vm1098 = vcmp.eq.s32.totalorder %v1066, 1
  %vm1099 = vcmp.eq.s32.totalorder %v1067, 1
  %vm1100 = vcmp.eq.s32.totalorder %v1068, 1
  %vm1101 = vcmp.eq.s32.totalorder %v1069, 1
  %vm1102 = vcmp.eq.s32.totalorder %v1070, 1
  %vm1103 = vcmp.eq.s32.totalorder %v1071, 1
  %vm1104 = vcmp.eq.s32.totalorder %v1072, 1
  %vm1105 = vcmp.eq.s32.totalorder %v1073, 1
  %vm1106 = vcmp.eq.s32.totalorder %v1074, 1
  %vm1107 = vcmp.eq.s32.totalorder %v1075, 1
  %vm1108 = vcmp.eq.s32.totalorder %v1076, 1
  %v1109 = vsel %vm1077, %v948, 0.0
  %v1110 = vsel %vm1078, %v949, 0.0
  %v1111 = vsel %vm1079, %v950, 0.0
  %v1112 = vsel %vm1080, %v951, 0.0
  %v1113 = vsel %vm1081, %v952, 0.0
  %v1114 = vsel %vm1082, %v953, 0.0
  %v1115 = vsel %vm1083, %v954, 0.0
  %v1116 = vsel %vm1084, %v955, 0.0
  %v1117 = vsel %vm1085, %v956, 0.0
  %v1118 = vsel %vm1086, %v957, 0.0
  %v1119 = vsel %vm1087, %v958, 0.0
  %v1120 = vsel %vm1088, %v959, 0.0
  %v1121 = vsel %vm1089, %v960, 0.0
  %v1122 = vsel %vm1090, %v961, 0.0
  %v1123 = vsel %vm1091, %v962, 0.0
  %v1124 = vsel %vm1092, %v963, 0.0
  %v1125 = vsel %vm1093, %v964, 0.0
  %v1126 = vsel %vm1094, %v965, 0.0
  %v1127 = vsel %vm1095, %v966, 0.0
  %v1128 = vsel %vm1096, %v967, 0.0
  %v1129 = vsel %vm1097, %v968, 0.0
  %v1130 = vsel %vm1098, %v969, 0.0
  %v1131 = vsel %vm1099, %v970, 0.0
  %v1132 = vsel %vm1100, %v971, 0.0
  %v1133 = vsel %vm1101, %v972, 0.0
  %v1134 = vsel %vm1102, %v973, 0.0
  %v1135 = vsel %vm1103, %v974, 0.0
  %v1136 = vsel %vm1104, %v975, 0.0
  %v1137 = vsel %vm1105, %v976, 0.0
  %v1138 = vsel %vm1106, %v977, 0.0
  %v1139 = vsel %vm1107, %v978, 0.0
  %v1140 = vsel %vm1108, %v979, 0.0
  %v1141 = vadd.f32 %v1109, %v1110
  %v1142 = vadd.f32 %v1141, %v1111
  %v1143 = vadd.f32 %v1142, %v1112
  %v1144 = vadd.f32 %v1143, %v1113
  %v1145 = vadd.f32 %v1144, %v1114
  %v1146 = vadd.f32 %v1145, %v1115
  %v1147 = vadd.f32 %v1146, %v1116
  %v1148 = vadd.f32 %v1147, %v1117
  %v1149 = vadd.f32 %v1148, %v1118
  %v1150 = vadd.f32 %v1149, %v1119
  %v1151 = vadd.f32 %v1150, %v1120
  %v1152 = vadd.f32 %v1151, %v1121
  %v1153 = vadd.f32 %v1152, %v1122
  %v1154 = vadd.f32 %v1153, %v1123
  %v1155 = vadd.f32 %v1154, %v1124
  %v1156 = vadd.f32 %v1155, %v1125
  %v1157 = vadd.f32 %v1156, %v1126
  %v1158 = vadd.f32 %v1157, %v1127
  %v1159 = vadd.f32 %v1158, %v1128
  %v1160 = vadd.f32 %v1159, %v1129
  %v1161 = vadd.f32 %v1160, %v1130
  %v1162 = vadd.f32 %v1161, %v1131
  %v1163 = vadd.f32 %v1162, %v1132
  %v1164 = vadd.f32 %v1163, %v1133
  %v1165 = vadd.f32 %v1164, %v1134
  %v1166 = vadd.f32 %v1165, %v1135
  %v1167 = vadd.f32 %v1166, %v1136
  %v1168 = vadd.f32 %v1167, %v1137
  %v1169 = vadd.f32 %v1168, %v1138
  %v1170 = vadd.f32 %v1169, %v1139
  %v1171 = vadd.f32 %v1170, %v1140
  %v1172 = vrot.slane %v1171, 4
  %v1173 = vadd.f32 %v1171, %v1172
  %v1174 = vrot.slane %v1173, 2
  %v1175 = vadd.f32 %v1173, %v1174
  %v1176 = vrot.slane %v1175, 1
  %v1177 = vadd.f32 %v1175, %v1176
  %v1178 = vrcp.pop 200.0
  %v1179 = vmul.f32 200.0, %v1178
  %v1180 = vsub.f32 1.0, %v1179
  %v1181 = vmul.f32 %v1178, %v1180
  %v1182 = vadd.f32 %v1178, %v1181
  %vm1183 = vweird.f32 %v1178
  %v1184 = vsel %vm1183, %v1178, %v1182
  %v1185 = vmul.f32 %v1177, %v1184
  %v1186 = vmul.f32 %v1109, %v1109
  %v1187 = vmul.f32 %v1110, %v1110
  %v1188 = vmul.f32 %v1111, %v1111
  %v1189 = vmul.f32 %v1112, %v1112
  %v1190 = vmul.f32 %v1113, %v1113
  %v1191 = vmul.f32 %v1114, %v1114
  %v1192 = vmul.f32 %v1115, %v1115
  %v1193 = vmul.f32 %v1116, %v1116
  %v1194 = vmul.f32 %v1117, %v1117
  %v1195 = vmul.f32 %v1118, %v1118
  %v1196 = vmul.f32 %v1119, %v1119
  %v1197 = vmul.f32 %v1120, %v1120
  %v1198 = vmul.f32 %v1121, %v1121
  %v1199 = vmul.f32 %v1122, %v1122
  %v1200 = vmul.f32 %v1123, %v1123
  %v1201 = vmul.f32 %v1124, %v1124
  %v1202 = vmul.f32 %v1125, %v1125
  %v1203 = vmul.f32 %v1126, %v1126
  %v1204 = vmul.f32 %v1127, %v1127
  %v1205 = vmul.f32 %v1128, %v1128
  %v1206 = vmul.f32 %v1129, %v1129
  %v1207 = vmul.f32 %v1130, %v1130
  %v1208 = vmul.f32 %v1131, %v1131
  %v1209 = vmul.f32 %v1132, %v1132
  %v1210 = vmul.f32 %v1133, %v1133
  %v1211 = vmul.f32 %v1134, %v1134
  %v1212 = vmul.f32 %v1135, %v1135
  %v1213 = vmul.f32 %v1136, %v1136
  %v1214 = vmul.f32 %v1137, %v1137
  %v1215 = vmul.f32 %v1138, %v1138
  %v1216 = vmul.f32 %v1139, %v1139
  %v1217 = vmul.f32 %v1140, %v1140
  %v1218 = vadd.f32 %v1186, %v1187
  %v1219 = vadd.f32 %v1218, %v1188
  %v1220 = vadd.f32 %v1219, %v1189
  %v1221 = vadd.f32 %v1220, %v1190
  %v1222 = vadd.f32 %v1221, %v1191
  %v1223 = vadd.f32 %v1222, %v1192
  %v1224 = vadd.f32 %v1223, %v1193
  %v1225 = vadd.f32 %v1224, %v1194
  %v1226 = vadd.f32 %v1225, %v1195
  %v1227 = vadd.f32 %v1226, %v1196
  %v1228 = vadd.f32 %v1227, %v1197
  %v1229 = vadd.f32 %v1228, %v1198
  %v1230 = vadd.f32 %v1229, %v1199
  %v1231 = vadd.f32 %v1230, %v1200
  %v1232 = vadd.f32 %v1231, %v1201
  %v1233 = vadd.f32 %v1232, %v1202
  %v1234 = vadd.f32 %v1233, %v1203
  %v1235 = vadd.f32 %v1234, %v1204
  %v1236 = vadd.f32 %v1235, %v1205
  %v1237 = vadd.f32 %v1236, %v1206
  %v1238 = vadd.f32 %v1237, %v1207
  %v1239 = vadd.f32 %v1238, %v1208
  %v1240 = vadd.f32 %v1239, %v1209
  %v1241 = vadd.f32 %v1240, %v1210
  %v1242 = vadd.f32 %v1241, %v1211
  %v1243 = vadd.f32 %v1242, %v1212
  %v1244 = vadd.f32 %v1243, %v1213
  %v1245 = vadd.f32 %v1244, %v1214
  %v1246 = vadd.f32 %v1245, %v1215
  %v1247 = vadd.f32 %v1246, %v1216
  %v1248 = vadd.f32 %v1247, %v1217
  %v1249 = vrot.slane %v1248, 4
  %v1250 = vadd.f32 %v1248, %v1249
  %v1251 = vrot.slane %v1250, 2
  %v1252 = vadd.f32 %v1250, %v1251
  %v1253 = vrot.slane %v1252, 1
  %v1254 = vadd.f32 %v1252, %v1253
  %v1255 = vmul.f32 %v1254, %v1184
  %v1256 = vmul.f32 %v1185, %v1185
  %v1257 = vsub.f32 %v1255, %v1256
  %v1258 = vmax.f32 %v1257, 0.0
  %v1259 = vadd.f32 %v1258, 1e-05
  %v1260 = vrsqrt.pop %v1259
  %v1261 = vmul.f32 %v1260, %v1259
  %v1262 = vmul.f32 %v1261, %v1260
  %v1263 = vmul.f32 0.5, %v1262
  %v1264 = vsub.f32 1.5, %v1263
  %v1265 = vmul.f32 %v1260, %v1264
  %vm1266 = vweird.f32 %v1259
  %vm1267 = vweird.f32 %v1260
  %vm1268 = vmor %vm1266, %vm1267
  %v1269 = vsel %vm1268, %v1260, %v1265
  %v1270 = vld [vmem:[%s6] sm:$0x1]
  %v1271 = vmul.f32 %v1270, %v1269
  %v1272 = vld [vmem:[%s7] sm:$0x1]
  %v1273 = vmul.f32 %v1185, %v1271
  %v1274 = vsub.f32 %v1272, %v1273
  %v1276 = vperm.slane %v1271, 0
  %v1278 = vmul.f32 %v948, %v1276
  %v1279 = vmul.f32 %v949, %v1276
  %v1280 = vmul.f32 %v950, %v1276
  %v1281 = vmul.f32 %v951, %v1276
  %v1282 = vmul.f32 %v952, %v1276
  %v1283 = vmul.f32 %v953, %v1276
  %v1284 = vmul.f32 %v954, %v1276
  %v1285 = vmul.f32 %v955, %v1276
  %v1286 = vmul.f32 %v956, %v1276
  %v1287 = vmul.f32 %v957, %v1276
  %v1288 = vmul.f32 %v958, %v1276
  %v1289 = vmul.f32 %v959, %v1276
  %v1290 = vmul.f32 %v960, %v1276
  %v1291 = vmul.f32 %v961, %v1276
  %v1292 = vmul.f32 %v962, %v1276
  %v1293 = vmul.f32 %v963, %v1276
  %v1294 = vmul.f32 %v964, %v1276
  %v1295 = vmul.f32 %v965, %v1276
  %v1296 = vmul.f32 %v966, %v1276
  %v1297 = vmul.f32 %v967, %v1276
  %v1298 = vmul.f32 %v968, %v1276
  %v1299 = vmul.f32 %v969, %v1276
  %v1300 = vmul.f32 %v970, %v1276
  %v1301 = vmul.f32 %v971, %v1276
  %v1302 = vmul.f32 %v972, %v1276
  %v1303 = vmul.f32 %v973, %v1276
  %v1304 = vmul.f32 %v974, %v1276
  %v1305 = vmul.f32 %v975, %v1276
  %v1306 = vmul.f32 %v976, %v1276
  %v1307 = vmul.f32 %v977, %v1276
  %v1308 = vmul.f32 %v978, %v1276
  %v1309 = vmul.f32 %v979, %v1276
  %v1311 = vperm.slane %v1274, 0
  %v1313 = vadd.f32 %v1278, %v1311
  %v1314 = vadd.f32 %v1279, %v1311
  %v1315 = vadd.f32 %v1280, %v1311
  %v1316 = vadd.f32 %v1281, %v1311
  %v1317 = vadd.f32 %v1282, %v1311
  %v1318 = vadd.f32 %v1283, %v1311
  %v1319 = vadd.f32 %v1284, %v1311
  %v1320 = vadd.f32 %v1285, %v1311
  %v1321 = vadd.f32 %v1286, %v1311
  %v1322 = vadd.f32 %v1287, %v1311
  %v1323 = vadd.f32 %v1288, %v1311
  %v1324 = vadd.f32 %v1289, %v1311
  %v1325 = vadd.f32 %v1290, %v1311
  %v1326 = vadd.f32 %v1291, %v1311
  %v1327 = vadd.f32 %v1292, %v1311
  %v1328 = vadd.f32 %v1293, %v1311
  %v1329 = vadd.f32 %v1294, %v1311
  %v1330 = vadd.f32 %v1295, %v1311
  %v1331 = vadd.f32 %v1296, %v1311
  %v1332 = vadd.f32 %v1297, %v1311
  %v1333 = vadd.f32 %v1298, %v1311
  %v1334 = vadd.f32 %v1299, %v1311
  %v1335 = vadd.f32 %v1300, %v1311
  %v1336 = vadd.f32 %v1301, %v1311
  %v1337 = vadd.f32 %v1302, %v1311
  %v1338 = vadd.f32 %v1303, %v1311
  %v1339 = vadd.f32 %v1304, %v1311
  %v1340 = vadd.f32 %v1305, %v1311
  %v1341 = vadd.f32 %v1306, %v1311
  %v1342 = vadd.f32 %v1307, %v1311
  %v1343 = vadd.f32 %v1308, %v1311
  %v1344 = vadd.f32 %v1309, %v1311
  %v1345 = vld [vmem:[%s8] sm:$0xff]
  %v1346 = vld [vmem:[%s8 + $0x8] sm:$0xff]
  %v1347 = vld [vmem:[%s8 + $0x10] sm:$0xff]
  %v1348 = vld [vmem:[%s8 + $0x18] sm:$0xff]
  %v1349 = vld [vmem:[%s8 + $0x20] sm:$0xff]
  %v1350 = vld [vmem:[%s8 + $0x28] sm:$0xff]
  %v1351 = vld [vmem:[%s8 + $0x30] sm:$0xff]
  %v1352 = vld [vmem:[%s8 + $0x38] sm:$0xff]
  %v1353 = vld [vmem:[%s8 + $0x40] sm:$0xff]
  %v1354 = vld [vmem:[%s8 + $0x48] sm:$0xff]
  %v1355 = vld [vmem:[%s8 + $0x50] sm:$0xff]
  %v1356 = vld [vmem:[%s8 + $0x58] sm:$0xff]
  %v1357 = vld [vmem:[%s8 + $0x60] sm:$0xff]
  %v1358 = vld [vmem:[%s8 + $0x68] sm:$0xff]
  %v1359 = vld [vmem:[%s8 + $0x70] sm:$0xff]
  %v1360 = vld [vmem:[%s8 + $0x78] sm:$0xff]
  %v1361 = vld [vmem:[%s9] sm:$0x1]
  %v1363 = vperm.slane %v1361, 0
  %1365 = vmatpush.msra.mxu0 %v1360
  %1366 = vmatpush.msra.mxu0 %v1359
  %1367 = vmatpush.msra.mxu0 %v1358
  %1368 = vmatpush.msra.mxu0 %v1357
  %1369 = vmatpush.msra.mxu0 %v1356
  %1370 = vmatpush.msra.mxu0 %v1355
  %1371 = vmatpush.msra.mxu0 %v1354
  %1372 = vmatpush.msra.mxu0 %v1353
  %1373 = vmatpush.msra.mxu0 %v1352
  %1374 = vmatpush.msra.mxu0 %v1351
  %1375 = vmatpush.msra.mxu0 %v1350
  %1376 = vmatpush.msra.mxu0 %v1349
  %1377 = vmatpush.msra.mxu0 %v1348
  %1378 = vmatpush.msra.mxu0 %v1347
  %1379 = vmatpush.msra.mxu0 %v1346
  %1380 = vmatpush.msra.mxu0 %v1345
  %1381 = vmatmul.f32.gmra.mxu0 %v1313
  %v1382 = vpop.f32.mrf.mxu0
  %v1383 = vadd.f32 %v1363, %v1382
  %1384 = vmatmul.f32.gmra.mxu0 %v1314
  %v1385 = vpop.f32.mrf.mxu0
  %v1386 = vadd.f32 %v1363, %v1385
  %1387 = vmatmul.f32.gmra.mxu0 %v1315
  %v1388 = vpop.f32.mrf.mxu0
  %v1389 = vadd.f32 %v1363, %v1388
  %1390 = vmatmul.f32.gmra.mxu0 %v1316
  %v1391 = vpop.f32.mrf.mxu0
  %v1392 = vadd.f32 %v1363, %v1391
  %1393 = vmatmul.f32.gmra.mxu0 %v1317
  %v1394 = vpop.f32.mrf.mxu0
  %v1395 = vadd.f32 %v1363, %v1394
  %1396 = vmatmul.f32.gmra.mxu0 %v1318
  %v1397 = vpop.f32.mrf.mxu0
  %v1398 = vadd.f32 %v1363, %v1397
  %1399 = vmatmul.f32.gmra.mxu0 %v1319
  %v1400 = vpop.f32.mrf.mxu0
  %v1401 = vadd.f32 %v1363, %v1400
  %1402 = vmatmul.f32.gmra.mxu0 %v1320
  %v1403 = vpop.f32.mrf.mxu0
  %v1404 = vadd.f32 %v1363, %v1403
  %1405 = vmatmul.f32.gmra.mxu0 %v1321
  %v1406 = vpop.f32.mrf.mxu0
  %v1407 = vadd.f32 %v1363, %v1406
  %1408 = vmatmul.f32.gmra.mxu0 %v1322
  %v1409 = vpop.f32.mrf.mxu0
  %v1410 = vadd.f32 %v1363, %v1409
  %1411 = vmatmul.f32.gmra.mxu0 %v1323
  %v1412 = vpop.f32.mrf.mxu0
  %v1413 = vadd.f32 %v1363, %v1412
  %1414 = vmatmul.f32.gmra.mxu0 %v1324
  %v1415 = vpop.f32.mrf.mxu0
  %v1416 = vadd.f32 %v1363, %v1415
  %1417 = vmatmul.f32.gmra.mxu0 %v1325
  %v1418 = vpop.f32.mrf.mxu0
  %v1419 = vadd.f32 %v1363, %v1418
  %1420 = vmatmul.f32.gmra.mxu0 %v1326
  %v1421 = vpop.f32.mrf.mxu0
  %v1422 = vadd.f32 %v1363, %v1421
  %1423 = vmatmul.f32.gmra.mxu0 %v1327
  %v1424 = vpop.f32.mrf.mxu0
  %v1425 = vadd.f32 %v1363, %v1424
  %1426 = vmatmul.f32.gmra.mxu0 %v1328
  %v1427 = vpop.f32.mrf.mxu0
  %v1428 = vadd.f32 %v1363, %v1427
  %1429 = vmatmul.f32.gmra.mxu0 %v1329
  %v1430 = vpop.f32.mrf.mxu0
  %v1431 = vadd.f32 %v1363, %v1430
  %1432 = vmatmul.f32.gmra.mxu0 %v1330
  %v1433 = vpop.f32.mrf.mxu0
  %v1434 = vadd.f32 %v1363, %v1433
  %1435 = vmatmul.f32.gmra.mxu0 %v1331
  %v1436 = vpop.f32.mrf.mxu0
  %v1437 = vadd.f32 %v1363, %v1436
  %1438 = vmatmul.f32.gmra.mxu0 %v1332
  %v1439 = vpop.f32.mrf.mxu0
  %v1440 = vadd.f32 %v1363, %v1439
  %1441 = vmatmul.f32.gmra.mxu0 %v1333
  %v1442 = vpop.f32.mrf.mxu0
  %v1443 = vadd.f32 %v1363, %v1442
  %1444 = vmatmul.f32.gmra.mxu0 %v1334
  %v1445 = vpop.f32.mrf.mxu0
  %v1446 = vadd.f32 %v1363, %v1445
  %1447 = vmatmul.f32.gmra.mxu0 %v1335
  %v1448 = vpop.f32.mrf.mxu0
  %v1449 = vadd.f32 %v1363, %v1448
  %1450 = vmatmul.f32.gmra.mxu0 %v1336
  %v1451 = vpop.f32.mrf.mxu0
  %v1452 = vadd.f32 %v1363, %v1451
  %1453 = vmatmul.f32.gmra.mxu0 %v1337
  %v1454 = vpop.f32.mrf.mxu0
  %v1455 = vadd.f32 %v1363, %v1454
  %1456 = vmatmul.f32.gmra.mxu0 %v1338
  %v1457 = vpop.f32.mrf.mxu0
  %v1458 = vadd.f32 %v1363, %v1457
  %1459 = vmatmul.f32.gmra.mxu0 %v1339
  %v1460 = vpop.f32.mrf.mxu0
  %v1461 = vadd.f32 %v1363, %v1460
  %1462 = vmatmul.f32.gmra.mxu0 %v1340
  %v1463 = vpop.f32.mrf.mxu0
  %v1464 = vadd.f32 %v1363, %v1463
  %1465 = vmatmul.f32.gmra.mxu0 %v1341
  %v1466 = vpop.f32.mrf.mxu0
  %v1467 = vadd.f32 %v1363, %v1466
  %1468 = vmatmul.f32.gmra.mxu0 %v1342
  %v1469 = vpop.f32.mrf.mxu0
  %v1470 = vadd.f32 %v1363, %v1469
  %1471 = vmatmul.f32.gmra.mxu0 %v1343
  %v1472 = vpop.f32.mrf.mxu0
  %v1473 = vadd.f32 %v1363, %v1472
  %1474 = vmatmul.f32.gmra.mxu0 %v1344
  %v1475 = vpop.f32.mrf.mxu0
  %v1476 = vadd.f32 %v1363, %v1475
  %1477 = vdwg.mxu0
  %v1478 = vmul.f32 %v267, %v267
  %v1479 = vmul.f32 %v268, %v268
  %v1480 = vmul.f32 %v269, %v269
  %v1481 = vmul.f32 %v270, %v270
  %v1482 = vmul.f32 %v271, %v271
  %v1483 = vmul.f32 %v272, %v272
  %v1484 = vmul.f32 %v273, %v273
  %v1485 = vmul.f32 %v274, %v274
  %v1486 = vmul.f32 %v275, %v275
  %v1487 = vmul.f32 %v276, %v276
  %v1488 = vmul.f32 %v277, %v277
  %v1489 = vmul.f32 %v278, %v278
  %v1490 = vmul.f32 %v279, %v279
  %v1491 = vmul.f32 %v280, %v280
  %v1492 = vmul.f32 %v281, %v281
  %v1493 = vmul.f32 %v282, %v282
  %v1494 = vmul.f32 %v283, %v283
  %v1495 = vmul.f32 %v284, %v284
  %v1496 = vmul.f32 %v285, %v285
  %v1497 = vmul.f32 %v286, %v286
  %v1498 = vmul.f32 %v287, %v287
  %v1499 = vmul.f32 %v288, %v288
  %v1500 = vmul.f32 %v289, %v289
  %v1501 = vmul.f32 %v290, %v290
  %v1502 = vmul.f32 %v291, %v291
  %v1503 = vmul.f32 %v292, %v292
  %v1504 = vmul.f32 %v293, %v293
  %v1505 = vmul.f32 %v294, %v294
  %v1506 = vmul.f32 %v295, %v295
  %v1507 = vmul.f32 %v296, %v296
  %v1508 = vmul.f32 %v297, %v297
  %v1509 = vmul.f32 %v298, %v298
  %v1510 = vsub.f32 1.0, %v1478
  %v1511 = vsub.f32 1.0, %v1479
  %v1512 = vsub.f32 1.0, %v1480
  %v1513 = vsub.f32 1.0, %v1481
  %v1514 = vsub.f32 1.0, %v1482
  %v1515 = vsub.f32 1.0, %v1483
  %v1516 = vsub.f32 1.0, %v1484
  %v1517 = vsub.f32 1.0, %v1485
  %v1518 = vsub.f32 1.0, %v1486
  %v1519 = vsub.f32 1.0, %v1487
  %v1520 = vsub.f32 1.0, %v1488
  %v1521 = vsub.f32 1.0, %v1489
  %v1522 = vsub.f32 1.0, %v1490
  %v1523 = vsub.f32 1.0, %v1491
  %v1524 = vsub.f32 1.0, %v1492
  %v1525 = vsub.f32 1.0, %v1493
  %v1526 = vsub.f32 1.0, %v1494
  %v1527 = vsub.f32 1.0, %v1495
  %v1528 = vsub.f32 1.0, %v1496
  %v1529 = vsub.f32 1.0, %v1497
  %v1530 = vsub.f32 1.0, %v1498
  %v1531 = vsub.f32 1.0, %v1499
  %v1532 = vsub.f32 1.0, %v1500
  %v1533 = vsub.f32 1.0, %v1501
  %v1534 = vsub.f32 1.0, %v1502
  %v1535 = vsub.f32 1.0, %v1503
  %v1536 = vsub.f32 1.0, %v1504
  %v1537 = vsub.f32 1.0, %v1505
  %v1538 = vsub.f32 1.0, %v1506
  %v1539 = vsub.f32 1.0, %v1507
  %v1540 = vsub.f32 1.0, %v1508
  %v1541 = vsub.f32 1.0, %v1509
  %v1542 = vmul.f32 %v1383, %v1510
  %v1543 = vmul.f32 %v1386, %v1511
  %v1544 = vmul.f32 %v1389, %v1512
  %v1545 = vmul.f32 %v1392, %v1513
  %v1546 = vmul.f32 %v1395, %v1514
  %v1547 = vmul.f32 %v1398, %v1515
  %v1548 = vmul.f32 %v1401, %v1516
  %v1549 = vmul.f32 %v1404, %v1517
  %v1550 = vmul.f32 %v1407, %v1518
  %v1551 = vmul.f32 %v1410, %v1519
  %v1552 = vmul.f32 %v1413, %v1520
  %v1553 = vmul.f32 %v1416, %v1521
  %v1554 = vmul.f32 %v1419, %v1522
  %v1555 = vmul.f32 %v1422, %v1523
  %v1556 = vmul.f32 %v1425, %v1524
  %v1557 = vmul.f32 %v1428, %v1525
  %v1558 = vmul.f32 %v1431, %v1526
  %v1559 = vmul.f32 %v1434, %v1527
  %v1560 = vmul.f32 %v1437, %v1528
  %v1561 = vmul.f32 %v1440, %v1529
  %v1562 = vmul.f32 %v1443, %v1530
  %v1563 = vmul.f32 %v1446, %v1531
  %v1564 = vmul.f32 %v1449, %v1532
  %v1565 = vmul.f32 %v1452, %v1533
  %v1566 = vmul.f32 %v1455, %v1534
  %v1567 = vmul.f32 %v1458, %v1535
  %v1568 = vmul.f32 %v1461, %v1536
  %v1569 = vmul.f32 %v1464, %v1537
  %v1570 = vmul.f32 %v1467, %v1538
  %v1571 = vmul.f32 %v1470, %v1539
  %v1572 = vmul.f32 %v1473, %v1540
  %v1573 = vmul.f32 %v1476, %v1541
  %v1574 = vld [vmem:[%s10] sm:$0xff]
  %v1575 = vld [vmem:[%s10 + $0x8] sm:$0xff]
  %v1576 = vld [vmem:[%s10 + $0x10] sm:$0xff]
  %v1577 = vld [vmem:[%s10 + $0x18] sm:$0xff]
  %v1578 = vld [vmem:[%s10 + $0x20] sm:$0xff]
  %v1579 = vld [vmem:[%s10 + $0x28] sm:$0xff]
  %v1580 = vld [vmem:[%s10 + $0x30] sm:$0xff]
  %v1581 = vld [vmem:[%s10 + $0x38] sm:$0xff]
  %v1582 = vld [vmem:[%s10 + $0x40] sm:$0xff]
  %v1583 = vld [vmem:[%s10 + $0x48] sm:$0xff]
  %v1584 = vld [vmem:[%s10 + $0x50] sm:$0xff]
  %v1585 = vld [vmem:[%s10 + $0x58] sm:$0xff]
  %v1586 = vld [vmem:[%s10 + $0x60] sm:$0xff]
  %v1587 = vld [vmem:[%s10 + $0x68] sm:$0xff]
  %v1588 = vld [vmem:[%s10 + $0x70] sm:$0xff]
  %v1589 = vld [vmem:[%s10 + $0x78] sm:$0xff]
  %1590 = vmatpush.msra.mxu0 %v1589
  %1591 = vmatpush.msra.mxu0 %v1588
  %1592 = vmatpush.msra.mxu0 %v1587
  %1593 = vmatpush.msra.mxu0 %v1586
  %1594 = vmatpush.msra.mxu0 %v1585
  %1595 = vmatpush.msra.mxu0 %v1584
  %1596 = vmatpush.msra.mxu0 %v1583
  %1597 = vmatpush.msra.mxu0 %v1582
  %1598 = vmatpush.msra.mxu0 %v1581
  %1599 = vmatpush.msra.mxu0 %v1580
  %1600 = vmatpush.msra.mxu0 %v1579
  %1601 = vmatpush.msra.mxu0 %v1578
  %1602 = vmatpush.msra.mxu0 %v1577
  %1603 = vmatpush.msra.mxu0 %v1576
  %1604 = vmatpush.msra.mxu0 %v1575
  %1605 = vmatpush.msra.mxu0 %v1574
  %1606 = vmatmul.f32.gmra.mxu0 %v1542
  %v1607 = vpop.f32.mrf.mxu0
  %v1608 = vadd.f32 0.0, %v1607
  %1609 = vmatmul.f32.gmra.mxu0 %v1543
  %v1610 = vpop.f32.mrf.mxu0
  %v1611 = vadd.f32 0.0, %v1610
  %1612 = vmatmul.f32.gmra.mxu0 %v1544
  %v1613 = vpop.f32.mrf.mxu0
  %v1614 = vadd.f32 0.0, %v1613
  %1615 = vmatmul.f32.gmra.mxu0 %v1545
  %v1616 = vpop.f32.mrf.mxu0
  %v1617 = vadd.f32 0.0, %v1616
  %1618 = vmatmul.f32.gmra.mxu0 %v1546
  %v1619 = vpop.f32.mrf.mxu0
  %v1620 = vadd.f32 0.0, %v1619
  %1621 = vmatmul.f32.gmra.mxu0 %v1547
  %v1622 = vpop.f32.mrf.mxu0
  %v1623 = vadd.f32 0.0, %v1622
  %1624 = vmatmul.f32.gmra.mxu0 %v1548
  %v1625 = vpop.f32.mrf.mxu0
  %v1626 = vadd.f32 0.0, %v1625
  %1627 = vmatmul.f32.gmra.mxu0 %v1549
  %v1628 = vpop.f32.mrf.mxu0
  %v1629 = vadd.f32 0.0, %v1628
  %1630 = vmatmul.f32.gmra.mxu0 %v1550
  %v1631 = vpop.f32.mrf.mxu0
  %v1632 = vadd.f32 0.0, %v1631
  %1633 = vmatmul.f32.gmra.mxu0 %v1551
  %v1634 = vpop.f32.mrf.mxu0
  %v1635 = vadd.f32 0.0, %v1634
  %1636 = vmatmul.f32.gmra.mxu0 %v1552
  %v1637 = vpop.f32.mrf.mxu0
  %v1638 = vadd.f32 0.0, %v1637
  %1639 = vmatmul.f32.gmra.mxu0 %v1553
  %v1640 = vpop.f32.mrf.mxu0
  %v1641 = vadd.f32 0.0, %v1640
  %1642 = vmatmul.f32.gmra.mxu0 %v1554
  %v1643 = vpop.f32.mrf.mxu0
  %v1644 = vadd.f32 0.0, %v1643
  %1645 = vmatmul.f32.gmra.mxu0 %v1555
  %v1646 = vpop.f32.mrf.mxu0
  %v1647 = vadd.f32 0.0, %v1646
  %1648 = vmatmul.f32.gmra.mxu0 %v1556
  %v1649 = vpop.f32.mrf.mxu0
  %v1650 = vadd.f32 0.0, %v1649
  %1651 = vmatmul.f32.gmra.mxu0 %v1557
  %v1652 = vpop.f32.mrf.mxu0
  %v1653 = vadd.f32 0.0, %v1652
  %1654 = vmatmul.f32.gmra.mxu0 %v1558
  %v1655 = vpop.f32.mrf.mxu0
  %v1656 = vadd.f32 0.0, %v1655
  %1657 = vmatmul.f32.gmra.mxu0 %v1559
  %v1658 = vpop.f32.mrf.mxu0
  %v1659 = vadd.f32 0.0, %v1658
  %1660 = vmatmul.f32.gmra.mxu0 %v1560
  %v1661 = vpop.f32.mrf.mxu0
  %v1662 = vadd.f32 0.0, %v1661
  %1663 = vmatmul.f32.gmra.mxu0 %v1561
  %v1664 = vpop.f32.mrf.mxu0
  %v1665 = vadd.f32 0.0, %v1664
  %1666 = vmatmul.f32.gmra.mxu0 %v1562
  %v1667 = vpop.f32.mrf.mxu0
  %v1668 = vadd.f32 0.0, %v1667
  %1669 = vmatmul.f32.gmra.mxu0 %v1563
  %v1670 = vpop.f32.mrf.mxu0
  %v1671 = vadd.f32 0.0, %v1670
  %1672 = vmatmul.f32.gmra.mxu0 %v1564
  %v1673 = vpop.f32.mrf.mxu0
  %v1674 = vadd.f32 0.0, %v1673
  %1675 = vmatmul.f32.gmra.mxu0 %v1565
  %v1676 = vpop.f32.mrf.mxu0
  %v1677 = vadd.f32 0.0, %v1676
  %1678 = vmatmul.f32.gmra.mxu0 %v1566
  %v1679 = vpop.f32.mrf.mxu0
  %v1680 = vadd.f32 0.0, %v1679
  %1681 = vmatmul.f32.gmra.mxu0 %v1567
  %v1682 = vpop.f32.mrf.mxu0
  %v1683 = vadd.f32 0.0, %v1682
  %1684 = vmatmul.f32.gmra.mxu0 %v1568
  %v1685 = vpop.f32.mrf.mxu0
  %v1686 = vadd.f32 0.0, %v1685
  %1687 = vmatmul.f32.gmra.mxu0 %v1569
  %v1688 = vpop.f32.mrf.mxu0
  %v1689 = vadd.f32 0.0, %v1688
  %1690 = vmatmul.f32.gmra.mxu0 %v1570
  %v1691 = vpop.f32.mrf.mxu0
  %v1692 = vadd.f32 0.0, %v1691
  %1693 = vmatmul.f32.gmra.mxu0 %v1571
  %v1694 = vpop.f32.mrf.mxu0
  %v1695 = vadd.f32 0.0, %v1694
  %1696 = vmatmul.f32.gmra.mxu0 %v1572
  %v1697 = vpop.f32.mrf.mxu0
  %v1698 = vadd.f32 0.0, %v1697
  %1699 = vmatmul.f32.gmra.mxu0 %v1573
  %v1700 = vpop.f32.mrf.mxu0
  %v1701 = vadd.f32 0.0, %v1700
  %1702 = vdwg.mxu0
  %v1703 = vmul.f32 %v38, %v1608
  %v1704 = vmul.f32 %v39, %v1611
  %v1705 = vmul.f32 %v40, %v1614
  %v1706 = vmul.f32 %v41, %v1617
  %v1707 = vmul.f32 %v42, %v1620
  %v1708 = vmul.f32 %v43, %v1623
  %v1709 = vmul.f32 %v44, %v1626
  %v1710 = vmul.f32 %v45, %v1629
  %v1711 = vmul.f32 %v46, %v1632
  %v1712 = vmul.f32 %v47, %v1635
  %v1713 = vmul.f32 %v48, %v1638
  %v1714 = vmul.f32 %v49, %v1641
  %v1715 = vmul.f32 %v50, %v1644
  %v1716 = vmul.f32 %v51, %v1647
  %v1717 = vmul.f32 %v52, %v1650
  %v1718 = vmul.f32 %v53, %v1653
  %v1719 = vmul.f32 %v54, %v1656
  %v1720 = vmul.f32 %v55, %v1659
  %v1721 = vmul.f32 %v56, %v1662
  %v1722 = vmul.f32 %v57, %v1665
  %v1723 = vmul.f32 %v58, %v1668
  %v1724 = vmul.f32 %v59, %v1671
  %v1725 = vmul.f32 %v60, %v1674
  %v1726 = vmul.f32 %v61, %v1677
  %v1727 = vmul.f32 %v62, %v1680
  %v1728 = vmul.f32 %v63, %v1683
  %v1729 = vmul.f32 %v64, %v1686
  %v1730 = vmul.f32 %v65, %v1689
  %v1731 = vmul.f32 %v66, %v1692
  %v1732 = vmul.f32 %v67, %v1695
  %v1733 = vmul.f32 %v68, %v1698
  %v1734 = vmul.f32 %v69, %v1701
  %1735 = vadd.xlane.f32.xlu0 %v1703
  %v1736 = vpop.xlane.xlu0 %1735
  %1737 = vadd.xlane.f32.xlu0 %v1704
  %v1738 = vpop.xlane.xlu0 %1737
  %1739 = vadd.xlane.f32.xlu0 %v1705
  %v1740 = vpop.xlane.xlu0 %1739
  %1741 = vadd.xlane.f32.xlu0 %v1706
  %v1742 = vpop.xlane.xlu0 %1741
  %1743 = vadd.xlane.f32.xlu0 %v1707
  %v1744 = vpop.xlane.xlu0 %1743
  %1745 = vadd.xlane.f32.xlu0 %v1708
  %v1746 = vpop.xlane.xlu0 %1745
  %1747 = vadd.xlane.f32.xlu0 %v1709
  %v1748 = vpop.xlane.xlu0 %1747
  %1749 = vadd.xlane.f32.xlu0 %v1710
  %v1750 = vpop.xlane.xlu0 %1749
  %1751 = vadd.xlane.f32.xlu0 %v1711
  %v1752 = vpop.xlane.xlu0 %1751
  %1753 = vadd.xlane.f32.xlu0 %v1712
  %v1754 = vpop.xlane.xlu0 %1753
  %1755 = vadd.xlane.f32.xlu0 %v1713
  %v1756 = vpop.xlane.xlu0 %1755
  %1757 = vadd.xlane.f32.xlu0 %v1714
  %v1758 = vpop.xlane.xlu0 %1757
  %1759 = vadd.xlane.f32.xlu0 %v1715
  %v1760 = vpop.xlane.xlu0 %1759
  %1761 = vadd.xlane.f32.xlu0 %v1716
  %v1762 = vpop.xlane.xlu0 %1761
  %1763 = vadd.xlane.f32.xlu0 %v1717
  %v1764 = vpop.xlane.xlu0 %1763
  %1765 = vadd.xlane.f32.xlu0 %v1718
  %v1766 = vpop.xlane.xlu0 %1765
  %1767 = vadd.xlane.f32.xlu0 %v1719
  %v1768 = vpop.xlane.xlu0 %1767
  %1769 = vadd.xlane.f32.xlu0 %v1720
  %v1770 = vpop.xlane.xlu0 %1769
  %1771 = vadd.xlane.f32.xlu0 %v1721
  %v1772 = vpop.xlane.xlu0 %1771
  %1773 = vadd.xlane.f32.xlu0 %v1722
  %v1774 = vpop.xlane.xlu0 %1773
  %1775 = vadd.xlane.f32.xlu0 %v1723
  %v1776 = vpop.xlane.xlu0 %1775
  %1777 = vadd.xlane.f32.xlu0 %v1724
  %v1778 = vpop.xlane.xlu0 %1777
  %1779 = vadd.xlane.f32.xlu0 %v1725
  %v1780 = vpop.xlane.xlu0 %1779
  %1781 = vadd.xlane.f32.xlu0 %v1726
  %v1782 = vpop.xlane.xlu0 %1781
  %1783 = vadd.xlane.f32.xlu0 %v1727
  %v1784 = vpop.xlane.xlu0 %1783
  %1785 = vadd.xlane.f32.xlu0 %v1728
  %v1786 = vpop.xlane.xlu0 %1785
  %1787 = vadd.xlane.f32.xlu0 %v1729
  %v1788 = vpop.xlane.xlu0 %1787
  %1789 = vadd.xlane.f32.xlu0 %v1730
  %v1790 = vpop.xlane.xlu0 %1789
  %1791 = vadd.xlane.f32.xlu0 %v1731
  %v1792 = vpop.xlane.xlu0 %1791
  %1793 = vadd.xlane.f32.xlu0 %v1732
  %v1794 = vpop.xlane.xlu0 %1793
  %1795 = vadd.xlane.f32.xlu0 %v1733
  %v1796 = vpop.xlane.xlu0 %1795
  %1797 = vadd.xlane.f32.xlu0 %v1734
  %v1798 = vpop.xlane.xlu0 %1797
  %v1799 = vmul.f32 %v1736, %v38
  %v1800 = vmul.f32 %v1738, %v39
  %v1801 = vmul.f32 %v1740, %v40
  %v1802 = vmul.f32 %v1742, %v41
  %v1803 = vmul.f32 %v1744, %v42
  %v1804 = vmul.f32 %v1746, %v43
  %v1805 = vmul.f32 %v1748, %v44
  %v1806 = vmul.f32 %v1750, %v45
  %v1807 = vmul.f32 %v1752, %v46
  %v1808 = vmul.f32 %v1754, %v47
  %v1809 = vmul.f32 %v1756, %v48
  %v1810 = vmul.f32 %v1758, %v49
  %v1811 = vmul.f32 %v1760, %v50
  %v1812 = vmul.f32 %v1762, %v51
  %v1813 = vmul.f32 %v1764, %v52
  %v1814 = vmul.f32 %v1766, %v53
  %v1815 = vmul.f32 %v1768, %v54
  %v1816 = vmul.f32 %v1770, %v55
  %v1817 = vmul.f32 %v1772, %v56
  %v1818 = vmul.f32 %v1774, %v57
  %v1819 = vmul.f32 %v1776, %v58
  %v1820 = vmul.f32 %v1778, %v59
  %v1821 = vmul.f32 %v1780, %v60
  %v1822 = vmul.f32 %v1782, %v61
  %v1823 = vmul.f32 %v1784, %v62
  %v1824 = vmul.f32 %v1786, %v63
  %v1825 = vmul.f32 %v1788, %v64
  %v1826 = vmul.f32 %v1790, %v65
  %v1827 = vmul.f32 %v1792, %v66
  %v1828 = vmul.f32 %v1794, %v67
  %v1829 = vmul.f32 %v1796, %v68
  %v1830 = vmul.f32 %v1798, %v69
  %v1831 = vsub.f32 %v1608, %v1799
  %v1832 = vsub.f32 %v1611, %v1800
  %v1833 = vsub.f32 %v1614, %v1801
  %v1834 = vsub.f32 %v1617, %v1802
  %v1835 = vsub.f32 %v1620, %v1803
  %v1836 = vsub.f32 %v1623, %v1804
  %v1837 = vsub.f32 %v1626, %v1805
  %v1838 = vsub.f32 %v1629, %v1806
  %v1839 = vsub.f32 %v1632, %v1807
  %v1840 = vsub.f32 %v1635, %v1808
  %v1841 = vsub.f32 %v1638, %v1809
  %v1842 = vsub.f32 %v1641, %v1810
  %v1843 = vsub.f32 %v1644, %v1811
  %v1844 = vsub.f32 %v1647, %v1812
  %v1845 = vsub.f32 %v1650, %v1813
  %v1846 = vsub.f32 %v1653, %v1814
  %v1847 = vsub.f32 %v1656, %v1815
  %v1848 = vsub.f32 %v1659, %v1816
  %v1849 = vsub.f32 %v1662, %v1817
  %v1850 = vsub.f32 %v1665, %v1818
  %v1851 = vsub.f32 %v1668, %v1819
  %v1852 = vsub.f32 %v1671, %v1820
  %v1853 = vsub.f32 %v1674, %v1821
  %v1854 = vsub.f32 %v1677, %v1822
  %v1855 = vsub.f32 %v1680, %v1823
  %v1856 = vsub.f32 %v1683, %v1824
  %v1857 = vsub.f32 %v1686, %v1825
  %v1858 = vsub.f32 %v1689, %v1826
  %v1859 = vsub.f32 %v1692, %v1827
  %v1860 = vsub.f32 %v1695, %v1828
  %v1861 = vsub.f32 %v1698, %v1829
  %v1862 = vsub.f32 %v1701, %v1830
  %1863 = vst [vmem:[%s11] sm:$0xff] %v1831
  %1864 = vst [vmem:[%s11 + $0x8] sm:$0xff] %v1832
  %1865 = vst [vmem:[%s11 + $0x10] sm:$0xff] %v1833
  %1866 = vst [vmem:[%s11 + $0x18] sm:$0xff] %v1834
  %1867 = vst [vmem:[%s11 + $0x20] sm:$0xff] %v1835
  %1868 = vst [vmem:[%s11 + $0x28] sm:$0xff] %v1836
  %1869 = vst [vmem:[%s11 + $0x30] sm:$0xff] %v1837
  %1870 = vst [vmem:[%s11 + $0x38] sm:$0xff] %v1838
  %1871 = vst [vmem:[%s11 + $0x40] sm:$0xff] %v1839
  %1872 = vst [vmem:[%s11 + $0x48] sm:$0xff] %v1840
  %1873 = vst [vmem:[%s11 + $0x50] sm:$0xff] %v1841
  %1874 = vst [vmem:[%s11 + $0x58] sm:$0xff] %v1842
  %1875 = vst [vmem:[%s11 + $0x60] sm:$0xff] %v1843
  %1876 = vst [vmem:[%s11 + $0x68] sm:$0xff] %v1844
  %1877 = vst [vmem:[%s11 + $0x70] sm:$0xff] %v1845
  %1878 = vst [vmem:[%s11 + $0x78] sm:$0xff] %v1846
  %1879 = vst [vmem:[%s11 + $0x80] sm:$0xff] %v1847
  %1880 = vst [vmem:[%s11 + $0x88] sm:$0xff] %v1848
  %1881 = vst [vmem:[%s11 + $0x90] sm:$0xff] %v1849
  %1882 = vst [vmem:[%s11 + $0x98] sm:$0xff] %v1850
  %1883 = vst [vmem:[%s11 + $0xa0] sm:$0xff] %v1851
  %1884 = vst [vmem:[%s11 + $0xa8] sm:$0xff] %v1852
  %1885 = vst [vmem:[%s11 + $0xb0] sm:$0xff] %v1853
  %1886 = vst [vmem:[%s11 + $0xb8] sm:$0xff] %v1854
  %1887 = vst [vmem:[%s11 + $0xc0] sm:$0xff] %v1855
  %1888 = vst [vmem:[%s11 + $0xc8] sm:$0xff] %v1856
  %1889 = vst [vmem:[%s11 + $0xd0] sm:$0xff] %v1857
  %1890 = vst [vmem:[%s11 + $0xd8] sm:$0xff] %v1858
  %1891 = vst [vmem:[%s11 + $0xe0] sm:$0xff] %v1859
  %1892 = vst [vmem:[%s11 + $0xe8] sm:$0xff] %v1860
  %1893 = vst [vmem:[%s11 + $0xf0] sm:$0xff] %v1861
  %1894 = vst [vmem:[%s11 + $0xf8] sm:$0xff] %v1862
  // Predicated region
  $region46: #{feature_map_vec_field_forward.1} parent=0 // pred_check
    _
  $region47: #{feature_map_vec_field_forward.1} parent=0 // pred_check_branch
    %1896 = sbr.rel (0) target = $region49
  $region48: #{feature_map_vec_field_forward.1} parent=0 // pred_region
    _
  $region49: #{feature_map_vec_field_forward.1} parent=0 // pred_fallthru
    _
  // Predicated region
  $region50: #{feature_map_vec_field_forward.1} parent=0 // pred_check
    _
  $region51: #{feature_map_vec_field_forward.1} parent=0 // pred_check_branch
    %1898 = sbr.rel (0) target = $region53
  $region52: #{feature_map_vec_field_forward.1} parent=0 // pred_region
    _
  $region53: #{feature_map_vec_field_forward.1} parent=0 // pred_fallthru
    _

</llo_original>
